<compile_context>
chip_gen: v7x
topology: tpu7x:2x2x1
jax: 0.10.0
libtpu: 0.0.40
codegen_flags: <defaults>
</compile_context>

<pallas_src>
import jax
import jax.numpy as jnp
import numpy as np
from jax import lax
from jax.experimental import pallas as pl
from jax.experimental.pallas import tpu as pltpu


def _critic_kernel(x_ref, tauexp_ref,
                   w1_ref, b1_ref, w2_ref, b2_ref,
                   wt_ref, bt_ref, wv1_ref, bv1_ref, wv2_ref, bv2_ref,
                   o_ref):
    # Per grid step (one ensemble group, Eg members, W = Eg*H lanes):
    #   x_ref      [B*T, D]      shared state_action, repeated per quantile
    #   tauexp_ref [B*T, Eg*C]   tau, lane-folded (column block m = member m)
    #   o_ref      [Eg, B*T]     lane-dense output
    BT, EgC = tauexp_ref.shape
    Eg, W = wv2_ref.shape
    C = EgC // Eg

    x = x_ref[...]

    # ---- q_trunk: Linear(D,H) -> relu -> Linear(H,H), all members at once ----
    h1 = jnp.maximum(
        jnp.dot(x, w1_ref[...], preferred_element_type=jnp.float32) + b1_ref[...], 0.0)
    h2 = jnp.dot(h1, w2_ref[...], preferred_element_type=jnp.float32) + b2_ref[...]    # [BT, W]

    # ---- cosine features: cos(tau * pi * k), k = 1..C, lane-folded per member ----
    lane = lax.broadcasted_iota(jnp.int32, (1, EgC), 1)
    range_pi = ((lane % C) + 1).astype(jnp.float32) * jnp.float32(np.pi)                # [1, Eg*C]
    cosines = jnp.cos(tauexp_ref[...] * range_pi)                                       # [BT, Eg*C]

    # ---- q_tau: Linear(C,H) -> relu  (block-diag keeps members independent) ----
    tau_feat = jnp.maximum(
        jnp.dot(cosines, wt_ref[...], preferred_element_type=jnp.float32) + bt_ref[...],
        0.0)                                                                            # [BT, W]

    # ---- broadcast-multiply is a plain elementwise op (rows already aligned) ----
    q = tau_feat * h2                                                                   # [BT, W]

    # ---- q_val: Linear(H,H) -> relu -> Linear(H,1) per member, both on the MXU ----
    v1 = jnp.maximum(
        jnp.dot(q, wv1_ref[...], preferred_element_type=jnp.float32) + bv1_ref[...], 0.0)
    # wv2 [Eg, W] . v1 [BT, W] contracting dim 1 of both -> [Eg, BT]; no explicit v1.T.
    out = lax.dot_general(wv2_ref[...], v1,
                          dimension_numbers=(((1,), (1,)), ((), ())),
                          preferred_element_type=jnp.float32) + bv2_ref[...]
    o_ref[...] = out                                                                    # [Eg, BT]


# ---------------- host-side, one-time weight-folding glue ----------------

def _fold_concat(w, G, Eg):
    # [E, A, H] -> [G, A, Eg*H]; member m of group g occupies columns m*H:(m+1)*H.
    _, A, H = w.shape
    return w.reshape(G, Eg, A, H).transpose(0, 2, 1, 3).reshape(G, A, Eg * H)


def _fold_block_diag(w, G, Eg):
    # [E, A, H] -> [G, Eg*A, Eg*H] block-diagonal per group.
    _, A, H = w.shape
    eye = jnp.eye(Eg, dtype=w.dtype)
    out = jnp.einsum('mn,gmah->gmanh', eye, w.reshape(G, Eg, A, H))
    return out.reshape(G, Eg * A, Eg * H)


def distributional_critic_forward(params, inputs, tau, *, groups=1):
    """inputs: [B, state_dim+action_dim]; tau: [num_q, B, num_quantiles] -> [num_q, B, T].

    groups: number of grid steps the ensemble is split into.  groups=1 folds the whole
    ensemble into the lane dimension (best on v5e/v6e, one TensorCore); on v7x use
    groups=2 so the ("parallel",) grid shards the ensemble across both TensorCores.
    """
    E, B, T = tau.shape
    _, D = inputs.shape
    H = params["w1"].shape[-1]
    C = params["wt"].shape[1]
    assert E % groups == 0
    G, Eg = groups, E // groups
    BT, W = B * T, Eg * H

    # --- layout glue: repeat_interleave rows, lane-fold tau and weights ---
    x_rep = jnp.repeat(inputs, T, axis=0)                                    # [BT, D]
    tau_exp = jnp.repeat(
        tau.reshape(G, Eg, BT).transpose(0, 2, 1), C, axis=2)                # [G, BT, Eg*C]

    w1f, b1f = _fold_concat(params["w1"], G, Eg), _fold_concat(params["b1"], G, Eg)
    w2f, b2f = _fold_block_diag(params["w2"], G, Eg), _fold_concat(params["b2"], G, Eg)
    wtf, btf = _fold_block_diag(params["wt"], G, Eg), _fold_concat(params["bt"], G, Eg)
    wv1f, bv1f = _fold_block_diag(params["wv1"], G, Eg), _fold_concat(params["bv1"], G, Eg)
    wv2f = _fold_block_diag(params["wv2"], G, Eg)                            # [G, Eg, Eg*H]
    bv2f = params["bv2"].reshape(G, Eg, 1)

    def per_g(shape):
        return pl.BlockSpec((None,) + shape, lambda g: (g, 0, 0))

    args = (x_rep, tau_exp, w1f, b1f, w2f, b2f, wtf, btf, wv1f, bv1f, wv2f, bv2f)
    flops = 2 * E * BT * (D * H + H * H + C * H + H * H + H)
    transcend = E * BT * C
    bytes_accessed = 4 * (sum(int(a.size) for a in args) + G * Eg * BT)

    out = pl.pallas_call(
        _critic_kernel,
        out_shape=jax.ShapeDtypeStruct((G, Eg, BT), jnp.float32),
        grid_spec=pltpu.PrefetchScalarGridSpec(
            num_scalar_prefetch=0,
            grid=(G,),
            in_specs=[
                pl.BlockSpec((BT, D), lambda g: (0, 0)),   # shared state_action
                per_g((BT, Eg * C)),                       # tau, lane-folded
                per_g((D, W)), per_g((1, W)),              # trunk layer 1 (concat)
                per_g((W, W)), per_g((1, W)),              # trunk layer 2 (block-diag)
                per_g((Eg * C, W)), per_g((1, W)),         # tau embedding (block-diag)
                per_g((W, W)), per_g((1, W)),              # value layer 1 (block-diag)
                per_g((Eg, W)), per_g((Eg, 1)),            # value layer 2 (row mask)
            ],
            out_specs=per_g((Eg, BT)),
        ),
        compiler_params=pltpu.CompilerParams(dimension_semantics=("parallel",)),
        cost_estimate=pl.CostEstimate(flops=flops, transcendentals=transcend,
                                      bytes_accessed=bytes_accessed),
    )(*args)
    return out.reshape(E, B, T)


def reference_forward(params, inputs, tau):
    """Pure-JAX reference matching the PyTorch module semantics."""
    E, B, T = tau.shape
    C = params["wt"].shape[1]
    x = jnp.broadcast_to(inputs[None], (E,) + inputs.shape)                     # [E,B,D]
    h1 = jax.nn.relu(jnp.einsum('ebd,edh->ebh', x, params["w1"]) + params["b1"])
    h2 = jnp.einsum('ebh,ehk->ebk', h1, params["w2"]) + params["b2"]            # [E,B,H]
    range_pi = jnp.arange(1, C + 1, dtype=jnp.float32) * jnp.float32(np.pi)
    cosines = jnp.cos(tau[..., None] * range_pi)                                # [E,B,T,C]
    tau_feat = jax.nn.relu(
        jnp.einsum('ebtc,ech->ebth', cosines, params["wt"]) + params["bt"][:, None])
    q = tau_feat * h2[:, :, None, :]
    v1 = jax.nn.relu(
        jnp.einsum('ebth,ehk->ebtk', q, params["wv1"]) + params["bv1"][:, None])
    v2 = jnp.einsum('ebth,eoh->ebto', v1, params["wv2"]) + params["bv2"][:, None]
    return v2[..., 0]                                                           # [E,B,T]


def init_params(key, E, D, H, C):
    ks = jax.random.split(key, 10)

    def w(k, shape, scale):
        return jax.random.normal(k, shape, jnp.float32) * scale

    return dict(
        w1=w(ks[0], (E, D, H), 1.0 / np.sqrt(D)),
        b1=w(ks[1], (E, 1, H), 0.01),
        w2=w(ks[2], (E, H, H), 1.0 / np.sqrt(H)),
        b2=w(ks[3], (E, 1, H), 0.01),
        wt=w(ks[4], (E, C, H), 1.0 / np.sqrt(C)),
        bt=w(ks[5], (E, 1, H), 0.01),
        wv1=w(ks[6], (E, H, H), 1.0 / np.sqrt(H)),
        bv1=w(ks[7], (E, 1, H), 0.01),
        wv2=w(ks[8], (E, 1, H), 0.003),   # edac_init: tiny last-layer weights
        bv2=w(ks[9], (E, 1, 1), 0.003),
    )


if __name__ == "__main__":
    key = jax.random.PRNGKey(0)
    state_dim, action_dim = 12, 4
    hidden_dim, cosines_dim = 32, 64
    num_q, batch, num_quantiles = 4, 8, 8
    D = state_dim + action_dim

    k_p, k_x, k_t = jax.random.split(key, 3)
    params = init_params(k_p, num_q, D, hidden_dim, cosines_dim)
    inputs = jax.random.normal(k_x, (batch, D), jnp.float32)
    tau = jax.random.uniform(k_t, (num_q, batch, num_quantiles), dtype=jnp.float32)

    ref = reference_forward(params, inputs, tau)

    # Fully collapsed grid: E*H = 128 lanes, one kernel step (best on v5e/v6e).
    out = jax.block_until_ready(distributional_critic_forward(params, inputs, tau, groups=1))
    assert out.shape == (num_q, batch, num_quantiles)
    np.testing.assert_allclose(np.asarray(out), np.asarray(ref), rtol=1e-2, atol=1e-3)

    # 2-way parallel grid (use groups=2 on v7x so both TensorCores share the ensemble).
    out2 = jax.block_until_ready(distributional_critic_forward(params, inputs, tau, groups=2))
    np.testing.assert_allclose(np.asarray(out2), np.asarray(ref), rtol=1e-2, atol=1e-3)

    print("KERNEL_OK")
</pallas_src>

<mosaic_0001>
module attributes {stable_mosaic.version = 11 : i64} {
  func.func @_critic_kernel(%arg0: i32, %arg1: memref<64x16xf32, #tpu.memory_space<vmem>>, %arg2: memref<1x64x256xf32, #tpu.memory_space<vmem>>, %arg3: memref<1x16x128xf32, #tpu.memory_space<vmem>>, %arg4: memref<1x1x128xf32, #tpu.memory_space<vmem>>, %arg5: memref<1x128x128xf32, #tpu.memory_space<vmem>>, %arg6: memref<1x1x128xf32, #tpu.memory_space<vmem>>, %arg7: memref<1x256x128xf32, #tpu.memory_space<vmem>>, %arg8: memref<1x1x128xf32, #tpu.memory_space<vmem>>, %arg9: memref<1x128x128xf32, #tpu.memory_space<vmem>>, %arg10: memref<1x1x128xf32, #tpu.memory_space<vmem>>, %arg11: memref<1x4x128xf32, #tpu.memory_space<vmem>>, %arg12: memref<1x4x1xf32, #tpu.memory_space<vmem>>, %arg13: memref<1x4x64xf32, #tpu.memory_space<vmem>>) attributes {dimension_semantics = [#tpu.dimension_semantics<parallel>], iteration_bounds = array<i64: 1>, scalar_prefetch = 0 : i64, scratch_operands = 0 : i64, tpu.core_type = #tpu.core_type<tc>, window_params = [{pipeline_mode = #tpu.pipeline_mode<synchronous>, transform_indices = @transform_0, window_bounds = array<i64: 64, 16>}, {transform_indices = @transform_1, window_bounds = array<i64: 1, 64, 256>}, {transform_indices = @transform_2, window_bounds = array<i64: 1, 16, 128>}, {transform_indices = @transform_3, window_bounds = array<i64: 1, 1, 128>}, {transform_indices = @transform_4, window_bounds = array<i64: 1, 128, 128>}, {transform_indices = @transform_5, window_bounds = array<i64: 1, 1, 128>}, {transform_indices = @transform_6, window_bounds = array<i64: 1, 256, 128>}, {transform_indices = @transform_7, window_bounds = array<i64: 1, 1, 128>}, {transform_indices = @transform_8, window_bounds = array<i64: 1, 128, 128>}, {transform_indices = @transform_9, window_bounds = array<i64: 1, 1, 128>}, {transform_indices = @transform_10, window_bounds = array<i64: 1, 4, 128>}, {transform_indices = @transform_11, window_bounds = array<i64: 1, 4, 1>}, {transform_indices = @transform_12, window_bounds = array<i64: 1, 4, 64>}]} {
    %c0 = arith.constant 0 : index
    %c0_0 = arith.constant 0 : index
    %0 = vector.load %arg1[%c0, %c0_0] : memref<64x16xf32, #tpu.memory_space<vmem>>, vector<64x16xf32>
    %c0_1 = arith.constant 0 : index
    %c0_2 = arith.constant 0 : index
    %c0_3 = arith.constant 0 : index
    %1 = vector.load %arg3[%c0_1, %c0_2, %c0_3] : memref<1x16x128xf32, #tpu.memory_space<vmem>>, vector<1x16x128xf32>
    %2 = vector.shape_cast %1 : vector<1x16x128xf32> to vector<16x128xf32>
    %cst = arith.constant dense<0.000000e+00> : vector<64x128xf32>
    %3 = tpu.matmul %0, %2, %cst {dimension_numbers = #tpu.dot_dimension_numbers<[1], [0], [0], [1], [0, 0, 1, 1], [], []>} : vector<64x16xf32>, vector<16x128xf32>, vector<64x128xf32> -> vector<64x128xf32>
    %c0_4 = arith.constant 0 : index
    %c0_5 = arith.constant 0 : index
    %c0_6 = arith.constant 0 : index
    %4 = vector.load %arg4[%c0_4, %c0_5, %c0_6] : memref<1x1x128xf32, #tpu.memory_space<vmem>>, vector<1x1x128xf32>
    %5 = vector.shape_cast %4 : vector<1x1x128xf32> to vector<1x128xf32>
    %6 = vector.broadcast %5 : vector<1x128xf32> to vector<64x128xf32>
    %7 = arith.addf %3, %6 : vector<64x128xf32>
    %cst_7 = arith.constant 0.000000e+00 : f32
    %8 = vector.broadcast %cst_7 : f32 to vector<64x128xf32>
    %9 = arith.maximumf %7, %8 : vector<64x128xf32>
    %c0_8 = arith.constant 0 : index
    %c0_9 = arith.constant 0 : index
    %c0_10 = arith.constant 0 : index
    %10 = vector.load %arg5[%c0_8, %c0_9, %c0_10] : memref<1x128x128xf32, #tpu.memory_space<vmem>>, vector<1x128x128xf32>
    %11 = vector.shape_cast %10 : vector<1x128x128xf32> to vector<128x128xf32>
    %cst_11 = arith.constant dense<0.000000e+00> : vector<64x128xf32>
    %12 = tpu.matmul %9, %11, %cst_11 {dimension_numbers = #tpu.dot_dimension_numbers<[1], [0], [0], [1], [0, 0, 1, 1], [], []>} : vector<64x128xf32>, vector<128x128xf32>, vector<64x128xf32> -> vector<64x128xf32>
    %c0_12 = arith.constant 0 : index
    %c0_13 = arith.constant 0 : index
    %c0_14 = arith.constant 0 : index
    %13 = vector.load %arg6[%c0_12, %c0_13, %c0_14] : memref<1x1x128xf32, #tpu.memory_space<vmem>>, vector<1x1x128xf32>
    %14 = vector.shape_cast %13 : vector<1x1x128xf32> to vector<1x128xf32>
    %15 = vector.broadcast %14 : vector<1x128xf32> to vector<64x128xf32>
    %16 = arith.addf %12, %15 : vector<64x128xf32>
    %17 = tpu.iota {dimensions = array<i32: 1>} : vector<1x256xi32>
    %c64_i32 = arith.constant 64 : i32
    %c0_i32 = arith.constant 0 : i32
    %18 = arith.cmpi eq, %c64_i32, %c0_i32 : i32
    %c1_i32 = arith.constant 1 : i32
    %19 = arith.select %18, %c1_i32, %c64_i32 : i32
    %20 = vector.broadcast %19 : i32 to vector<1x256xi32>
    %21 = arith.remsi %17, %20 : vector<1x256xi32>
    %c0_i32_15 = arith.constant 0 : i32
    %22 = vector.broadcast %c0_i32_15 : i32 to vector<1x256xi32>
    %23 = arith.cmpi ne, %21, %22 : vector<1x256xi32>
    %c0_i32_16 = arith.constant 0 : i32
    %24 = vector.broadcast %c0_i32_16 : i32 to vector<1x256xi32>
    %25 = arith.cmpi slt, %21, %24 : vector<1x256xi32>
    %c0_i32_17 = arith.constant 0 : i32
    %26 = arith.cmpi slt, %19, %c0_i32_17 : i32
    %27 = vector.broadcast %26 : i1 to vector<1x256xi1>
    %28 = vector.broadcast %27 : vector<1x256xi1> to vector<1x256xi1>
    %29 = arith.xori %25, %28 : vector<1x256xi1>
    %30 = arith.andi %29, %23 : vector<1x256xi1>
    %31 = vector.broadcast %19 : i32 to vector<1x256xi32>
    %32 = arith.addi %21, %31 : vector<1x256xi32>
    %33 = arith.select %30, %32, %21 : vector<1x256xi1>, vector<1x256xi32>
    %c1_i32_18 = arith.constant 1 : i32
    %34 = vector.broadcast %c1_i32_18 : i32 to vector<1x256xi32>
    %35 = arith.addi %33, %34 : vector<1x256xi32>
    %36 = arith.sitofp %35 : vector<1x256xi32> to vector<1x256xf32>
    %cst_19 = arith.constant 3.14159274 : f32
    %37 = vector.broadcast %cst_19 : f32 to vector<1x256xf32>
    %38 = arith.mulf %36, %37 : vector<1x256xf32>
    %c0_20 = arith.constant 0 : index
    %c0_21 = arith.constant 0 : index
    %c0_22 = arith.constant 0 : index
    %39 = vector.load %arg2[%c0_20, %c0_21, %c0_22] : memref<1x64x256xf32, #tpu.memory_space<vmem>>, vector<1x64x256xf32>
    %40 = vector.shape_cast %39 : vector<1x64x256xf32> to vector<64x256xf32>
    %41 = vector.broadcast %38 : vector<1x256xf32> to vector<64x256xf32>
    %42 = arith.mulf %40, %41 : vector<64x256xf32>
    %43 = math.cos %42 : vector<64x256xf32>
    %c0_23 = arith.constant 0 : index
    %c0_24 = arith.constant 0 : index
    %c0_25 = arith.constant 0 : index
    %44 = vector.load %arg7[%c0_23, %c0_24, %c0_25] : memref<1x256x128xf32, #tpu.memory_space<vmem>>, vector<1x256x128xf32>
    %45 = vector.shape_cast %44 : vector<1x256x128xf32> to vector<256x128xf32>
    %cst_26 = arith.constant dense<0.000000e+00> : vector<64x128xf32>
    %46 = tpu.matmul %43, %45, %cst_26 {dimension_numbers = #tpu.dot_dimension_numbers<[1], [0], [0], [1], [0, 0, 1, 1], [], []>} : vector<64x256xf32>, vector<256x128xf32>, vector<64x128xf32> -> vector<64x128xf32>
    %c0_27 = arith.constant 0 : index
    %c0_28 = arith.constant 0 : index
    %c0_29 = arith.constant 0 : index
    %47 = vector.load %arg8[%c0_27, %c0_28, %c0_29] : memref<1x1x128xf32, #tpu.memory_space<vmem>>, vector<1x1x128xf32>
    %48 = vector.shape_cast %47 : vector<1x1x128xf32> to vector<1x128xf32>
    %49 = vector.broadcast %48 : vector<1x128xf32> to vector<64x128xf32>
    %50 = arith.addf %46, %49 : vector<64x128xf32>
    %cst_30 = arith.constant 0.000000e+00 : f32
    %51 = vector.broadcast %cst_30 : f32 to vector<64x128xf32>
    %52 = arith.maximumf %50, %51 : vector<64x128xf32>
    %53 = arith.mulf %52, %16 : vector<64x128xf32>
    %c0_31 = arith.constant 0 : index
    %c0_32 = arith.constant 0 : index
    %c0_33 = arith.constant 0 : index
    %54 = vector.load %arg9[%c0_31, %c0_32, %c0_33] : memref<1x128x128xf32, #tpu.memory_space<vmem>>, vector<1x128x128xf32>
    %55 = vector.shape_cast %54 : vector<1x128x128xf32> to vector<128x128xf32>
    %cst_34 = arith.constant dense<0.000000e+00> : vector<64x128xf32>
    %56 = tpu.matmul %53, %55, %cst_34 {dimension_numbers = #tpu.dot_dimension_numbers<[1], [0], [0], [1], [0, 0, 1, 1], [], []>} : vector<64x128xf32>, vector<128x128xf32>, vector<64x128xf32> -> vector<64x128xf32>
    %c0_35 = arith.constant 0 : index
    %c0_36 = arith.constant 0 : index
    %c0_37 = arith.constant 0 : index
    %57 = vector.load %arg10[%c0_35, %c0_36, %c0_37] : memref<1x1x128xf32, #tpu.memory_space<vmem>>, vector<1x1x128xf32>
    %58 = vector.shape_cast %57 : vector<1x1x128xf32> to vector<1x128xf32>
    %59 = vector.broadcast %58 : vector<1x128xf32> to vector<64x128xf32>
    %60 = arith.addf %56, %59 : vector<64x128xf32>
    %cst_38 = arith.constant 0.000000e+00 : f32
    %61 = vector.broadcast %cst_38 : f32 to vector<64x128xf32>
    %62 = arith.maximumf %60, %61 : vector<64x128xf32>
    %c0_39 = arith.constant 0 : index
    %c0_40 = arith.constant 0 : index
    %c0_41 = arith.constant 0 : index
    %63 = vector.load %arg11[%c0_39, %c0_40, %c0_41] : memref<1x4x128xf32, #tpu.memory_space<vmem>>, vector<1x4x128xf32>
    %64 = vector.shape_cast %63 : vector<1x4x128xf32> to vector<4x128xf32>
    %cst_42 = arith.constant dense<0.000000e+00> : vector<4x64xf32>
    %65 = tpu.matmul %64, %62, %cst_42 {dimension_numbers = #tpu.dot_dimension_numbers<[1], [1], [0], [0], [0, 0, 1, 0], [], []>} : vector<4x128xf32>, vector<64x128xf32>, vector<4x64xf32> -> vector<4x64xf32>
    %c0_43 = arith.constant 0 : index
    %c0_44 = arith.constant 0 : index
    %c0_45 = arith.constant 0 : index
    %66 = vector.load %arg12[%c0_43, %c0_44, %c0_45] : memref<1x4x1xf32, #tpu.memory_space<vmem>>, vector<1x4x1xf32>
    %67 = vector.shape_cast %66 : vector<1x4x1xf32> to vector<4x1xf32>
    %68 = vector.broadcast %67 : vector<4x1xf32> to vector<4x64xf32>
    %69 = arith.addf %65, %68 : vector<4x64xf32>
    %c0_46 = arith.constant 0 : index
    %c0_47 = arith.constant 0 : index
    %c0_48 = arith.constant 0 : index
    %70 = vector.load %arg13[%c0_46, %c0_47, %c0_48] : memref<1x4x64xf32, #tpu.memory_space<vmem>>, vector<1x4x64xf32>
    %71 = vector.shape_cast %70 : vector<1x4x64xf32> to vector<4x64xf32>
    %72 = vector.shape_cast %69 : vector<4x64xf32> to vector<1x4x64xf32>
    tpu.vector_store %arg13[%c0_46, %c0_47, %c0_48], %72 {strides = array<i32>} : memref<1x4x64xf32, #tpu.memory_space<vmem>>, vector<1x4x64xf32>,
    return
  }
  func.func @transform_0(%arg0: i32) -> (i32, i32) {
    %c0_i32 = arith.constant 0 : i32
    %c0_i32_0 = arith.constant 0 : i32
    %c0_i32_1 = arith.constant 0 : i32
    return %c0_i32, %c0_i32_0 : i32, i32
  }
  func.func @transform_1(%arg0: i32) -> (i32, i32, i32) {
    %c0_i32 = arith.constant 0 : i32
    %c0_i32_0 = arith.constant 0 : i32
    %c0_i32_1 = arith.constant 0 : i32
    return %arg0, %c0_i32, %c0_i32_0 : i32, i32, i32
  }
  func.func @transform_2(%arg0: i32) -> (i32, i32, i32) {
    %c0_i32 = arith.constant 0 : i32
    %c0_i32_0 = arith.constant 0 : i32
    %c0_i32_1 = arith.constant 0 : i32
    return %arg0, %c0_i32, %c0_i32_0 : i32, i32, i32
  }
  func.func @transform_3(%arg0: i32) -> (i32, i32, i32) {
    %c0_i32 = arith.constant 0 : i32
    %c0_i32_0 = arith.constant 0 : i32
    %c0_i32_1 = arith.constant 0 : i32
    return %arg0, %c0_i32, %c0_i32_0 : i32, i32, i32
  }
  func.func @transform_4(%arg0: i32) -> (i32, i32, i32) {
    %c0_i32 = arith.constant 0 : i32
    %c0_i32_0 = arith.constant 0 : i32
    %c0_i32_1 = arith.constant 0 : i32
    return %arg0, %c0_i32, %c0_i32_0 : i32, i32, i32
  }
  func.func @transform_5(%arg0: i32) -> (i32, i32, i32) {
    %c0_i32 = arith.constant 0 : i32
    %c0_i32_0 = arith.constant 0 : i32
    %c0_i32_1 = arith.constant 0 : i32
    return %arg0, %c0_i32, %c0_i32_0 : i32, i32, i32
  }
  func.func @transform_6(%arg0: i32) -> (i32, i32, i32) {
    %c0_i32 = arith.constant 0 : i32
    %c0_i32_0 = arith.constant 0 : i32
    %c0_i32_1 = arith.constant 0 : i32
    return %arg0, %c0_i32, %c0_i32_0 : i32, i32, i32
  }
  func.func @transform_7(%arg0: i32) -> (i32, i32, i32) {
    %c0_i32 = arith.constant 0 : i32
    %c0_i32_0 = arith.constant 0 : i32
    %c0_i32_1 = arith.constant 0 : i32
    return %arg0, %c0_i32, %c0_i32_0 : i32, i32, i32
  }
  func.func @transform_8(%arg0: i32) -> (i32, i32, i32) {
    %c0_i32 = arith.constant 0 : i32
    %c0_i32_0 = arith.constant 0 : i32
    %c0_i32_1 = arith.constant 0 : i32
    return %arg0, %c0_i32, %c0_i32_0 : i32, i32, i32
  }
  func.func @transform_9(%arg0: i32) -> (i32, i32, i32) {
    %c0_i32 = arith.constant 0 : i32
    %c0_i32_0 = arith.constant 0 : i32
    %c0_i32_1 = arith.constant 0 : i32
    return %arg0, %c0_i32, %c0_i32_0 : i32, i32, i32
  }
  func.func @transform_10(%arg0: i32) -> (i32, i32, i32) {
    %c0_i32 = arith.constant 0 : i32
    %c0_i32_0 = arith.constant 0 : i32
    %c0_i32_1 = arith.constant 0 : i32
    return %arg0, %c0_i32, %c0_i32_0 : i32, i32, i32
  }
  func.func @transform_11(%arg0: i32) -> (i32, i32, i32) {
    %c0_i32 = arith.constant 0 : i32
    %c0_i32_0 = arith.constant 0 : i32
    %c0_i32_1 = arith.constant 0 : i32
    return %arg0, %c0_i32, %c0_i32_0 : i32, i32, i32
  }
  func.func @transform_12(%arg0: i32) -> (i32, i32, i32) {
    %c0_i32 = arith.constant 0 : i32
    %c0_i32_0 = arith.constant 0 : i32
    %c0_i32_1 = arith.constant 0 : i32
    return %arg0, %c0_i32, %c0_i32_0 : i32, i32, i32
  }
}

</mosaic_0001>

<llo_original>
// kernel: tpu_custom_call.1
$region0: #{tpu_custom_call.1}
  #allocation0 [shape = 'u32[]', space=smem, size = 0x4, offset = 0x4, fixed_abs, tag = 'smem constant byte address 0x4 - core index']
  #allocation1 [shape = 'u32[144,128]{1,0:T(1,128)}', space=vmem, size = 0x12000, scoped, tag = 'internal scratch']
  %s0 = inlined_call_operand.vmem [shape: f32[64,16], index: 0, kind: input, shape index: {}]
  %s1 = inlined_call_operand.hbm [shape: f32[1,64,256], index: 1, kind: input, shape index: {}]
  %s2 = inlined_call_operand.vmem [shape: f32[1,16,128], index: 2, kind: input, shape index: {}]
  %s3 = inlined_call_operand.vmem [shape: f32[1,1,128], index: 3, kind: input, shape index: {}]
  %s4 = inlined_call_operand.hbm [shape: f32[1,128,128], index: 4, kind: input, shape index: {}]
  %s5 = inlined_call_operand.vmem [shape: f32[1,1,128], index: 5, kind: input, shape index: {}]
  %s6 = inlined_call_operand.hbm [shape: f32[1,256,128], index: 6, kind: input, shape index: {}]
  %s7 = inlined_call_operand.vmem [shape: f32[1,1,128], index: 7, kind: input, shape index: {}]
  %s8 = inlined_call_operand.hbm [shape: f32[1,128,128], index: 8, kind: input, shape index: {}]
  %s9 = inlined_call_operand.vmem [shape: f32[1,1,128], index: 9, kind: input, shape index: {}]
  %s10 = inlined_call_operand.vmem [shape: f32[1,4,128], index: 10, kind: input, shape index: {}]
  %s11 = inlined_call_operand.vmem [shape: f32[1,4,1], index: 11, kind: input, shape index: {}]
  %s12 = inlined_call_operand.hbm [shape: f32[1,4,64], index: 12, kind: output, shape index: {}]
  %s13 = sld [smem:[#allocation0]]
  $region74: #{tpu_custom_call.1} parent=0
    _
  %s15 = ssub.s32 1, %s13
  %s16 = scalar_select 0, %s15, %s13
  $region1: #{tpu_custom_call.1} parent=0
    #allocation2 [shape = 'u8[65536]{0}', space=vmem, size = 0x10000, scoped, tag = 'input window, operand 1, single buffered']
    #allocation3 [shape = 's32[1]{0}', space=sflag, size = 0x4, scoped, tag = 'scoped memory for tpu_custom_call.1']
    #allocation4 [shape = 's32[1]{0}', space=sflag, size = 0x4, scoped, tag = 'scoped memory for tpu_custom_call.1']
    #allocation5 [shape = 'u8[65536]{0}', space=vmem, size = 0x10000, scoped, tag = 'input window, operand 4, single buffered']
    #allocation6 [shape = 's32[1]{0}', space=sflag, size = 0x4, scoped, tag = 'scoped memory for tpu_custom_call.1']
    #allocation7 [shape = 'u8[131072]{0}', space=vmem, size = 0x20000, scoped, tag = 'input window, operand 6, single buffered']
    #allocation8 [shape = 'u8[65536]{0}', space=vmem, size = 0x10000, scoped, tag = 'input window, operand 8, single buffered']
    #allocation9 [shape = 's32[1]{0}', space=sflag, size = 0x4, scoped, tag = 'scoped memory for tpu_custom_call.1']
    #allocation10 [shape = 'u8[2048]{0}', space=vmem, size = 0x800, scoped, tag = 'output window, operand 0, single buffered']
    %17 = vsyncpa [#allocation3], 0
    %18 = vsyncpa [#allocation6], 0
    %19 = vsyncpa [#allocation9], 0
    %20 = vsyncpa [#allocation4], 0
    // Predicated region
    $region2: #{tpu_custom_call.1} parent=1 // pred_check
      _
    $region3: #{tpu_custom_call.1} parent=1 // pred_check_branch
      %22 = sbr.rel (0) target = $region5
    $region4: #{tpu_custom_call.1} parent=1 // pred_region
      _
    $region5: #{tpu_custom_call.1} parent=1 // pred_fallthru
      _
    // Predicated region
    $region6: #{tpu_custom_call.1} parent=1 // pred_check
      _
    $region7: #{tpu_custom_call.1} parent=1 // pred_check_branch
      %24 = sbr.rel (0) target = $region9
    $region8: #{tpu_custom_call.1} parent=1 // pred_region
      %s26 = ssub.s32 2048, 2048
      %27 = vsyncadd [#allocation3], %s26
      %s28 = sshll.u32 [#allocation2], 4
      %s29 = int_to_ptr.vmem [resolvable:$true] %s28
      %34 = dma.hbm_to_vmem [thread:$0]  %s1, 2048, %s29, [#allocation3], 256, 256, 16
    $region9: #{tpu_custom_call.1} parent=1 // pred_fallthru
      _
    // Predicated region
    $region10: #{tpu_custom_call.1} parent=1 // pred_check
      _
    $region11: #{tpu_custom_call.1} parent=1 // pred_check_branch
      %36 = sbr.rel (0) target = $region13
    $region12: #{tpu_custom_call.1} parent=1 // pred_region
      _
    $region13: #{tpu_custom_call.1} parent=1 // pred_fallthru
      _
    // Predicated region
    $region14: #{tpu_custom_call.1} parent=1 // pred_check
      _
    $region15: #{tpu_custom_call.1} parent=1 // pred_check_branch
      %38 = sbr.rel (0) target = $region17
    $region16: #{tpu_custom_call.1} parent=1 // pred_region
      _
    $region17: #{tpu_custom_call.1} parent=1 // pred_fallthru
      _
    // Predicated region
    $region18: #{tpu_custom_call.1} parent=1 // pred_check
      _
    $region19: #{tpu_custom_call.1} parent=1 // pred_check_branch
      %40 = sbr.rel (0) target = $region21
    $region20: #{tpu_custom_call.1} parent=1 // pred_region
      %s42 = ssub.s32 2048, 2048
      %43 = vsyncadd [#allocation6], %s42
      %s44 = sshll.u32 [#allocation5], 4
      %s45 = int_to_ptr.vmem [resolvable:$true] %s44
      %50 = dma.hbm_to_vmem [thread:$0]  %s4, 2048, %s45, [#allocation6], 128, 128, 8
    $region21: #{tpu_custom_call.1} parent=1 // pred_fallthru
      _
    // Predicated region
    $region22: #{tpu_custom_call.1} parent=1 // pred_check
      _
    $region23: #{tpu_custom_call.1} parent=1 // pred_check_branch
      %52 = sbr.rel (0) target = $region25
    $region24: #{tpu_custom_call.1} parent=1 // pred_region
      _
    $region25: #{tpu_custom_call.1} parent=1 // pred_fallthru
      _
    // Predicated region
    $region26: #{tpu_custom_call.1} parent=1 // pred_check
      _
    $region27: #{tpu_custom_call.1} parent=1 // pred_check_branch
      %54 = sbr.rel (0) target = $region29
    $region28: #{tpu_custom_call.1} parent=1 // pred_region
      %s56 = ssub.s32 4096, 4096
      %57 = vsyncadd [#allocation6], %s56
      %s58 = sshll.u32 [#allocation7], 4
      %s59 = int_to_ptr.vmem [resolvable:$true] %s58
      %64 = dma.hbm_to_vmem [thread:$0]  %s6, 4096, %s59, [#allocation6], 128, 128, 8
    $region29: #{tpu_custom_call.1} parent=1 // pred_fallthru
      _
    // Predicated region
    $region30: #{tpu_custom_call.1} parent=1 // pred_check
      _
    $region31: #{tpu_custom_call.1} parent=1 // pred_check_branch
      %66 = sbr.rel (0) target = $region33
    $region32: #{tpu_custom_call.1} parent=1 // pred_region
      _
    $region33: #{tpu_custom_call.1} parent=1 // pred_fallthru
      _
    // Predicated region
    $region34: #{tpu_custom_call.1} parent=1 // pred_check
      _
    $region35: #{tpu_custom_call.1} parent=1 // pred_check_branch
      %68 = sbr.rel (0) target = $region37
    $region36: #{tpu_custom_call.1} parent=1 // pred_region
      %s70 = ssub.s32 2048, 2048
      %71 = vsyncadd [#allocation9], %s70
      %s72 = sshll.u32 [#allocation8], 4
      %s73 = int_to_ptr.vmem [resolvable:$true] %s72
      %78 = dma.hbm_to_vmem [thread:$0]  %s8, 2048, %s73, [#allocation9], 128, 128, 8
    $region37: #{tpu_custom_call.1} parent=1 // pred_fallthru
      _
    // Predicated region
    $region38: #{tpu_custom_call.1} parent=1 // pred_check
      _
    $region39: #{tpu_custom_call.1} parent=1 // pred_check_branch
      %80 = sbr.rel (0) target = $region41
    $region40: #{tpu_custom_call.1} parent=1 // pred_region
      _
    $region41: #{tpu_custom_call.1} parent=1 // pred_fallthru
      _
    // Predicated region
    $region42: #{tpu_custom_call.1} parent=1 // pred_check
      _
    $region43: #{tpu_custom_call.1} parent=1 // pred_check_branch
      %82 = sbr.rel (0) target = $region45
    $region44: #{tpu_custom_call.1} parent=1 // pred_region
      _
    $region45: #{tpu_custom_call.1} parent=1 // pred_fallthru
      _
    // Predicated region
    $region46: #{tpu_custom_call.1} parent=1 // pred_check
      _
    $region47: #{tpu_custom_call.1} parent=1 // pred_check_branch
      %84 = sbr.rel (0) target = $region49
    $region48: #{tpu_custom_call.1} parent=1 // pred_region
      _
    $region49: #{tpu_custom_call.1} parent=1 // pred_fallthru
      _
    // Predicated region
    $region50: #{tpu_custom_call.1} parent=1 // pred_check
      _
    $region51: #{tpu_custom_call.1} parent=1 // pred_check_branch
      %86 = sbr.rel (0) target = $region53
    $region52: #{tpu_custom_call.1} parent=1 // pred_region
      %87 = dma.done [#allocation3], 2048
    $region53: #{tpu_custom_call.1} parent=1 // pred_fallthru
      _
    // Predicated region
    $region54: #{tpu_custom_call.1} parent=1 // pred_check
      _
    $region55: #{tpu_custom_call.1} parent=1 // pred_check_branch
      %89 = sbr.rel (0) target = $region57
    $region56: #{tpu_custom_call.1} parent=1 // pred_region
      %90 = dma.done [#allocation6], 2048
    $region57: #{tpu_custom_call.1} parent=1 // pred_fallthru
      _
    // Predicated region
    $region58: #{tpu_custom_call.1} parent=1 // pred_check
      _
    $region59: #{tpu_custom_call.1} parent=1 // pred_check_branch
      %92 = sbr.rel (0) target = $region61
    $region60: #{tpu_custom_call.1} parent=1 // pred_region
      %93 = dma.done [#allocation6], 4096
    $region61: #{tpu_custom_call.1} parent=1 // pred_fallthru
      _
    // Predicated region
    $region62: #{tpu_custom_call.1} parent=1 // pred_check
      _
    $region63: #{tpu_custom_call.1} parent=1 // pred_check_branch
      %95 = sbr.rel (0) target = $region65
    $region64: #{tpu_custom_call.1} parent=1 // pred_region
      %96 = dma.done [#allocation9], 2048
    $region65: #{tpu_custom_call.1} parent=1 // pred_fallthru
      _
    %v97 = vld [vmem:[%s0] sm:$0xff]
    %v98 = vld [vmem:[%s0 + $0x8] sm:$0xff]
    %v99 = vld [vmem:[%s0 + $0x10] sm:$0xff]
    %v100 = vld [vmem:[%s0 + $0x18] sm:$0xff]
    %v101 = vld [vmem:[%s0 + $0x20] sm:$0xff]
    %v102 = vld [vmem:[%s0 + $0x28] sm:$0xff]
    %v103 = vld [vmem:[%s0 + $0x30] sm:$0xff]
    %v104 = vld [vmem:[%s0 + $0x38] sm:$0xff]
    %v105 = vld [vmem:[%s2] sm:$0xff]
    %v106 = vld [vmem:[%s2 + $0x8] sm:$0xff]
    %v107 = vld [vmem:[%s3] sm:$0x1]
    %v109 = vlaneseq
    %v110 = vshrl.u32 %v109, 7
    %v111 = vsub.s32 0, %v110
    %v112 = vrot.slane %v107, %v111
    %vm114 = vcmask 130048
    %v116 = vsel %vm114, %v97, 0
    %v119 = vsel %vm114, %v98, 0
    %v122 = vsel %vm114, %v99, 0
    %v125 = vsel %vm114, %v100, 0
    %v128 = vsel %vm114, %v101, 0
    %v131 = vsel %vm114, %v102, 0
    %v134 = vsel %vm114, %v103, 0
    %v137 = vsel %vm114, %v104, 0
    %139 = vmatprep.subr.mxu0 0.0
    %140 = vmatpush1.msra.mxu0 %v105
    %141 = vmatprep.subr.mxu0 0.0
    %142 = vmatpush1.msra.mxu0 %v106
    %143 = vmatprep.subr.mxu0 0.0
    %144 = vmatpush1.msra.mxu0 0.0
    %145 = vmatprep.subr.mxu0 0.0
    %146 = vmatpush1.msra.mxu0 0.0
    %147 = vmatprep.subr.mxu0 0.0
    %148 = vmatpush1.msra.mxu0 0.0
    %149 = vmatprep.subr.mxu0 0.0
    %150 = vmatpush1.msra.mxu0 0.0
    %151 = vmatprep.subr.mxu0 0.0
    %152 = vmatpush1.msra.mxu0 0.0
    %153 = vmatprep.subr.mxu0 0.0
    %154 = vmatpush1.msra.mxu0 0.0
    %155 = vmatprep.subr.mxu0 0.0
    %156 = vmatpush1.msra.mxu0 0.0
    %157 = vmatprep.subr.mxu0 0.0
    %158 = vmatpush1.msra.mxu0 0.0
    %159 = vmatprep.subr.mxu0 0.0
    %160 = vmatpush1.msra.mxu0 0.0
    %161 = vmatprep.subr.mxu0 0.0
    %162 = vmatpush1.msra.mxu0 0.0
    %163 = vmatprep.subr.mxu0 0.0
    %164 = vmatpush1.msra.mxu0 0.0
    %165 = vmatprep.subr.mxu0 0.0
    %166 = vmatpush1.msra.mxu0 0.0
    %167 = vmatprep.subr.mxu0 0.0
    %168 = vmatpush1.msra.mxu0 0.0
    %169 = vmatprep.subr.mxu0 0.0
    %170 = vmatpush1.msra.mxu0 0.0
    %171 = vmatprep.subr.mxu0 0.0
    %172 = vmatpush1.msra.mxu0 0.0
    %173 = vmatprep.subr.mxu0 0.0
    %174 = vmatpush1.msra.mxu0 0.0
    %175 = vmatprep.subr.mxu0 0.0
    %176 = vmatpush1.msra.mxu0 0.0
    %177 = vmatprep.subr.mxu0 0.0
    %178 = vmatpush1.msra.mxu0 0.0
    %179 = vmatprep.subr.mxu0 0.0
    %180 = vmatpush1.msra.mxu0 0.0
    %181 = vmatprep.subr.mxu0 0.0
    %182 = vmatpush1.msra.mxu0 0.0
    %183 = vmatprep.subr.mxu0 0.0
    %184 = vmatpush1.msra.mxu0 0.0
    %185 = vmatprep.subr.mxu0 0.0
    %186 = vmatpush1.msra.mxu0 0.0
    %187 = vmatprep.subr.mxu0 0.0
    %188 = vmatpush1.msra.mxu0 0.0
    %189 = vmatprep.subr.mxu0 0.0
    %190 = vmatpush1.msra.mxu0 0.0
    %191 = vmatprep.subr.mxu0 0.0
    %192 = vmatpush1.msra.mxu0 0.0
    %193 = vmatprep.subr.mxu0 0.0
    %194 = vmatpush1.msra.mxu0 0.0
    %195 = vmatprep.subr.mxu0 0.0
    %196 = vmatpush1.msra.mxu0 0.0
    %197 = vmatprep.subr.mxu0 0.0
    %198 = vmatpush1.msra.mxu0 0.0
    %199 = vmatprep.subr.mxu0 0.0
    %200 = vmatpush1.msra.mxu0 0.0
    %201 = vmatprep.subr.mxu0 0.0
    %202 = vmatpush1.msra.mxu0 0.0
    %203 = vmatprep.mubr.f32.mxu0 0.0
    %204 = vmatmul.mubr.f32.gmra.mrb[0].mxu0 %v116
    %v205 = vpop.f32.mrb[0].mxu0
    %v206 = vadd.f32 %v112, %v205
    %v207 = vpop.f32.mrb[0].mxu0
    %208 = vmatprep.mubr.f32.mxu0 0.0
    %209 = vmatmul.mubr.f32.gmra.mrb[0].mxu0 %v119
    %v210 = vpop.f32.mrb[0].mxu0
    %v211 = vadd.f32 %v112, %v210
    %v212 = vpop.f32.mrb[0].mxu0
    %213 = vmatprep.mubr.f32.mxu0 0.0
    %214 = vmatmul.mubr.f32.gmra.mrb[0].mxu0 %v122
    %v215 = vpop.f32.mrb[0].mxu0
    %v216 = vadd.f32 %v112, %v215
    %v217 = vpop.f32.mrb[0].mxu0
    %218 = vmatprep.mubr.f32.mxu0 0.0
    %219 = vmatmul.mubr.f32.gmra.mrb[0].mxu0 %v125
    %v220 = vpop.f32.mrb[0].mxu0
    %v221 = vadd.f32 %v112, %v220
    %v222 = vpop.f32.mrb[0].mxu0
    %223 = vmatprep.mubr.f32.mxu0 0.0
    %224 = vmatmul.mubr.f32.gmra.mrb[0].mxu0 %v128
    %v225 = vpop.f32.mrb[0].mxu0
    %v226 = vadd.f32 %v112, %v225
    %v227 = vpop.f32.mrb[0].mxu0
    %228 = vmatprep.mubr.f32.mxu0 0.0
    %229 = vmatmul.mubr.f32.gmra.mrb[0].mxu0 %v131
    %v230 = vpop.f32.mrb[0].mxu0
    %v231 = vadd.f32 %v112, %v230
    %v232 = vpop.f32.mrb[0].mxu0
    %233 = vmatprep.mubr.f32.mxu0 0.0
    %234 = vmatmul.mubr.f32.gmra.mrb[0].mxu0 %v134
    %v235 = vpop.f32.mrb[0].mxu0
    %v236 = vadd.f32 %v112, %v235
    %v237 = vpop.f32.mrb[0].mxu0
    %238 = vmatprep.mubr.f32.mxu0 0.0
    %239 = vmatmul.mubr.f32.gmra.mrb[0].mxu0 %v137
    %v240 = vpop.f32.mrb[0].mxu0
    %v241 = vadd.f32 %v112, %v240
    %v242 = vpop.f32.mrb[0].mxu0
    %243 = vdwg.mxu0
    %v244 = vmax.f32 %v206, 0.0
    %v245 = vmax.f32 %v211, 0.0
    %v246 = vmax.f32 %v216, 0.0
    %v247 = vmax.f32 %v221, 0.0
    %v248 = vmax.f32 %v226, 0.0
    %v249 = vmax.f32 %v231, 0.0
    %v250 = vmax.f32 %v236, 0.0
    %v251 = vmax.f32 %v241, 0.0
    %v252 = vld [vmem:[#allocation5] sm:$0xff]
    %v253 = vld [vmem:[#allocation5 + $0x8] sm:$0xff]
    %v254 = vld [vmem:[#allocation5 + $0x10] sm:$0xff]
    %v255 = vld [vmem:[#allocation5 + $0x18] sm:$0xff]
    %v256 = vld [vmem:[#allocation5 + $0x20] sm:$0xff]
    %v257 = vld [vmem:[#allocation5 + $0x28] sm:$0xff]
    %v258 = vld [vmem:[#allocation5 + $0x30] sm:$0xff]
    %v259 = vld [vmem:[#allocation5 + $0x38] sm:$0xff]
    %v260 = vld [vmem:[#allocation5 + $0x40] sm:$0xff]
    %v261 = vld [vmem:[#allocation5 + $0x48] sm:$0xff]
    %v262 = vld [vmem:[#allocation5 + $0x50] sm:$0xff]
    %v263 = vld [vmem:[#allocation5 + $0x58] sm:$0xff]
    %v264 = vld [vmem:[#allocation5 + $0x60] sm:$0xff]
    %v265 = vld [vmem:[#allocation5 + $0x68] sm:$0xff]
    %v266 = vld [vmem:[#allocation5 + $0x70] sm:$0xff]
    %v267 = vld [vmem:[#allocation5 + $0x78] sm:$0xff]
    %v268 = vld [vmem:[%s5] sm:$0x1]
    %v270 = vlaneseq
    %v271 = vshrl.u32 %v270, 7
    %v272 = vsub.s32 0, %v271
    %v273 = vrot.slane %v268, %v272
    %275 = vmatprep.subr.mxu0 0.0
    %276 = vmatpush1.msra.mxu0 %v252
    %277 = vmatprep.subr.mxu0 0.0
    %278 = vmatpush1.msra.mxu0 %v253
    %279 = vmatprep.subr.mxu0 0.0
    %280 = vmatpush1.msra.mxu0 %v254
    %281 = vmatprep.subr.mxu0 0.0
    %282 = vmatpush1.msra.mxu0 %v255
    %283 = vmatprep.subr.mxu0 0.0
    %284 = vmatpush1.msra.mxu0 %v256
    %285 = vmatprep.subr.mxu0 0.0
    %286 = vmatpush1.msra.mxu0 %v257
    %287 = vmatprep.subr.mxu0 0.0
    %288 = vmatpush1.msra.mxu0 %v258
    %289 = vmatprep.subr.mxu0 0.0
    %290 = vmatpush1.msra.mxu0 %v259
    %291 = vmatprep.subr.mxu0 0.0
    %292 = vmatpush1.msra.mxu0 %v260
    %293 = vmatprep.subr.mxu0 0.0
    %294 = vmatpush1.msra.mxu0 %v261
    %295 = vmatprep.subr.mxu0 0.0
    %296 = vmatpush1.msra.mxu0 %v262
    %297 = vmatprep.subr.mxu0 0.0
    %298 = vmatpush1.msra.mxu0 %v263
    %299 = vmatprep.subr.mxu0 0.0
    %300 = vmatpush1.msra.mxu0 %v264
    %301 = vmatprep.subr.mxu0 0.0
    %302 = vmatpush1.msra.mxu0 %v265
    %303 = vmatprep.subr.mxu0 0.0
    %304 = vmatpush1.msra.mxu0 %v266
    %305 = vmatprep.subr.mxu0 0.0
    %306 = vmatpush1.msra.mxu0 %v267
    %307 = vmatprep.subr.mxu0 0.0
    %308 = vmatpush1.msra.mxu0 0.0
    %309 = vmatprep.subr.mxu0 0.0
    %310 = vmatpush1.msra.mxu0 0.0
    %311 = vmatprep.subr.mxu0 0.0
    %312 = vmatpush1.msra.mxu0 0.0
    %313 = vmatprep.subr.mxu0 0.0
    %314 = vmatpush1.msra.mxu0 0.0
    %315 = vmatprep.subr.mxu0 0.0
    %316 = vmatpush1.msra.mxu0 0.0
    %317 = vmatprep.subr.mxu0 0.0
    %318 = vmatpush1.msra.mxu0 0.0
    %319 = vmatprep.subr.mxu0 0.0
    %320 = vmatpush1.msra.mxu0 0.0
    %321 = vmatprep.subr.mxu0 0.0
    %322 = vmatpush1.msra.mxu0 0.0
    %323 = vmatprep.subr.mxu0 0.0
    %324 = vmatpush1.msra.mxu0 0.0
    %325 = vmatprep.subr.mxu0 0.0
    %326 = vmatpush1.msra.mxu0 0.0
    %327 = vmatprep.subr.mxu0 0.0
    %328 = vmatpush1.msra.mxu0 0.0
    %329 = vmatprep.subr.mxu0 0.0
    %330 = vmatpush1.msra.mxu0 0.0
    %331 = vmatprep.subr.mxu0 0.0
    %332 = vmatpush1.msra.mxu0 0.0
    %333 = vmatprep.subr.mxu0 0.0
    %334 = vmatpush1.msra.mxu0 0.0
    %335 = vmatprep.subr.mxu0 0.0
    %336 = vmatpush1.msra.mxu0 0.0
    %337 = vmatprep.subr.mxu0 0.0
    %338 = vmatpush1.msra.mxu0 0.0
    %339 = vmatprep.mubr.f32.mxu0 0.0
    %340 = vmatmul.mubr.f32.gmra.mrb[0].mxu0 %v244
    %v341 = vpop.f32.mrb[0].mxu0
    %v342 = vadd.f32 %v273, %v341
    %v343 = vpop.f32.mrb[0].mxu0
    %344 = vmatprep.mubr.f32.mxu0 0.0
    %345 = vmatmul.mubr.f32.gmra.mrb[0].mxu0 %v245
    %v346 = vpop.f32.mrb[0].mxu0
    %v347 = vadd.f32 %v273, %v346
    %v348 = vpop.f32.mrb[0].mxu0
    %349 = vmatprep.mubr.f32.mxu0 0.0
    %350 = vmatmul.mubr.f32.gmra.mrb[0].mxu0 %v246
    %v351 = vpop.f32.mrb[0].mxu0
    %v352 = vadd.f32 %v273, %v351
    %v353 = vpop.f32.mrb[0].mxu0
    %354 = vmatprep.mubr.f32.mxu0 0.0
    %355 = vmatmul.mubr.f32.gmra.mrb[0].mxu0 %v247
    %v356 = vpop.f32.mrb[0].mxu0
    %v357 = vadd.f32 %v273, %v356
    %v358 = vpop.f32.mrb[0].mxu0
    %359 = vmatprep.mubr.f32.mxu0 0.0
    %360 = vmatmul.mubr.f32.gmra.mrb[0].mxu0 %v248
    %v361 = vpop.f32.mrb[0].mxu0
    %v362 = vadd.f32 %v273, %v361
    %v363 = vpop.f32.mrb[0].mxu0
    %364 = vmatprep.mubr.f32.mxu0 0.0
    %365 = vmatmul.mubr.f32.gmra.mrb[0].mxu0 %v249
    %v366 = vpop.f32.mrb[0].mxu0
    %v367 = vadd.f32 %v273, %v366
    %v368 = vpop.f32.mrb[0].mxu0
    %369 = vmatprep.mubr.f32.mxu0 0.0
    %370 = vmatmul.mubr.f32.gmra.mrb[0].mxu0 %v250
    %v371 = vpop.f32.mrb[0].mxu0
    %v372 = vadd.f32 %v273, %v371
    %v373 = vpop.f32.mrb[0].mxu0
    %374 = vmatprep.mubr.f32.mxu0 0.0
    %375 = vmatmul.mubr.f32.gmra.mrb[0].mxu0 %v251
    %v376 = vpop.f32.mrb[0].mxu0
    %v377 = vadd.f32 %v273, %v376
    %v378 = vpop.f32.mrb[0].mxu0
    %379 = vdwg.mxu0
    %v380 = vlaneseq
    %v381 = vand.u32 %v380, 127
    %v382 = vadd.s32 %v381, 128
    %vm383 = vcmp.lt.s32.totalorder %v381, 0
    %v384 = vsub.s32 0, %v381
    %v385 = vsel %vm383, %v384, %v381
    %v386 = vshrl.u32 %v385, 6
    %v387 = vand.u32 %v385, 63
    %v388 = vsub.s32 0, %v387
    %v389 = vsel %vm383, %v388, %v387
    %vm390 = vcmp.lt.s32.totalorder %v382, 0
    %v391 = vsub.s32 0, %v382
    %v392 = vsel %vm390, %v391, %v382
    %v393 = vshrl.u32 %v392, 6
    %v394 = vand.u32 %v392, 63
    %v395 = vsub.s32 0, %v394
    %v396 = vsel %vm390, %v395, %v394
    %vm397 = vcmp.ne.s32.totalorder %v389, 0
    %vm398 = vcmp.ne.s32.totalorder %v396, 0
    %vm399 = vcmp.lt.s32.totalorder %v389, 0
    %vm400 = vcmp.lt.s32.totalorder %v396, 0
    %vm401 = vmand %vm399, %vm397
    %vm402 = vmand %vm400, %vm398
    %v403 = vadd.s32 %v389, 64
    %v404 = vadd.s32 %v396, 64
    %v405 = vsel %vm401, %v403, %v389
    %v406 = vsel %vm402, %v404, %v396
    %v407 = vadd.s32 %v405, 1
    %v408 = vadd.s32 %v406, 1
    %v409 = vcvt.s32.f32 %v407
    %v410 = vcvt.s32.f32 %v408
    %v411 = vmul.f32 %v409, 3.1415927
    %v412 = vmul.f32 %v410, 3.1415927
    %v413 = vld [vmem:[#allocation2] sm:$0xff]
    %v414 = vld [vmem:[#allocation2 + $0x8] sm:$0xff]
    %v415 = vld [vmem:[#allocation2 + $0x10] sm:$0xff]
    %v416 = vld [vmem:[#allocation2 + $0x18] sm:$0xff]
    %v417 = vld [vmem:[#allocation2 + $0x20] sm:$0xff]
    %v418 = vld [vmem:[#allocation2 + $0x28] sm:$0xff]
    %v419 = vld [vmem:[#allocation2 + $0x30] sm:$0xff]
    %v420 = vld [vmem:[#allocation2 + $0x38] sm:$0xff]
    %v421 = vld [vmem:[#allocation2 + $0x40] sm:$0xff]
    %v422 = vld [vmem:[#allocation2 + $0x48] sm:$0xff]
    %v423 = vld [vmem:[#allocation2 + $0x50] sm:$0xff]
    %v424 = vld [vmem:[#allocation2 + $0x58] sm:$0xff]
    %v425 = vld [vmem:[#allocation2 + $0x60] sm:$0xff]
    %v426 = vld [vmem:[#allocation2 + $0x68] sm:$0xff]
    %v427 = vld [vmem:[#allocation2 + $0x70] sm:$0xff]
    %v428 = vld [vmem:[#allocation2 + $0x78] sm:$0xff]
    %v429 = vmul.f32 %v413, %v411
    %v430 = vmul.f32 %v414, %v412
    %v431 = vmul.f32 %v415, %v411
    %v432 = vmul.f32 %v416, %v412
    %v433 = vmul.f32 %v417, %v411
    %v434 = vmul.f32 %v418, %v412
    %v435 = vmul.f32 %v419, %v411
    %v436 = vmul.f32 %v420, %v412
    %v437 = vmul.f32 %v421, %v411
    %v438 = vmul.f32 %v422, %v412
    %v439 = vmul.f32 %v423, %v411
    %v440 = vmul.f32 %v424, %v412
    %v441 = vmul.f32 %v425, %v411
    %v442 = vmul.f32 %v426, %v412
    %v443 = vmul.f32 %v427, %v411
    %v444 = vmul.f32 %v428, %v412
    %v445 = vand.u32 2147483647, %v429
    %vm446 = vcmp.le.f32.partialorder %v445, 0.7853982
    %vm447 = vcmp.lt.s32.totalorder %v429, 0
    %v448 = vand.u32 %v429, 2139095040
    %v449 = vshrl.u32 %v448, 23
    %v450 = vsub.s32 %v449, 127
    %v451 = vand.u32 2147483647, %v429
    %v452 = vand.u32 %v451, 8388607
    %v453 = vor.u32 %v452, 8388608
    %v454 = vsub.s32 0, %v453
    %v455 = vadd.s32 %v450, 1
    %vm456 = vcmp.gt.s32.totalorder %v455, 0
    %v457 = vsel %vm456, %v455, 0
    %v458 = vshrl.u32 %v457, 5
    %v459 = vand.u32 %v457, 31
    %v460 = vsub.s32 32, %v459
    %v461 = vshrl.u32 683565275, %v460
    %v462 = vshll.u32 683565275, %v459
    %v463 = vshrl.u32 2475754826, %v460
    %v464 = vor.u32 %v462, %v463
    %v465 = vshll.u32 2475754826, %v459
    %v466 = vshrl.u32 2131351028, %v460
    %v467 = vor.u32 %v465, %v466
    %v468 = vshll.u32 2131351028, %v459
    %v469 = vshrl.u32 2102212464, %v460
    %v470 = vor.u32 %v468, %v469
    %v471 = vshll.u32 2102212464, %v459
    %v472 = vshrl.u32 920167782, %v460
    %v473 = vor.u32 %v471, %v472
    %v474 = vshll.u32 920167782, %v459
    %v475 = vshrl.u32 1326507024, %v460
    %v476 = vor.u32 %v474, %v475
    %vm477 = vcmp.lt.s32.totalorder %v458, 1
    %vm478 = vcmp.lt.s32.totalorder %v458, 2
    %vm479 = vcmp.lt.s32.totalorder %v458, 3
    %vm480 = vcmp.lt.s32.totalorder %v458, 4
    %v481 = vsel %vm477, %v461, %v464
    %v482 = vsel %vm480, %v470, 2102212464
    %v483 = vsel %vm479, %v467, %v482
    %v484 = vsel %vm478, %v481, %v483
    %v485 = vsel %vm477, %v464, %v467
    %v486 = vsel %vm480, %v473, 920167782
    %v487 = vsel %vm479, %v470, %v486
    %v488 = vsel %vm478, %v485, %v487
    %v489 = vsel %vm477, %v467, %v470
    %v490 = vsel %vm480, %v476, 1326507024
    %v491 = vsel %vm479, %v473, %v490
    %v492 = vsel %vm478, %v489, %v491
    %v493 = vshll.u32 %v453, 8
    %v494 = vmul.u32.u64.compose %v493, %v492
    %v495 = vextract.low.u32 %v494
    %v496 = vextract.high.u32 %v494
    %v497 = vmul.u32.u64.compose %v493, %v488
    %v498 = vextract.low.u32 %v497
    %v499 = vextract.high.u32 %v497
    %v500 = vmul.u32 %v493, %v484
    %v501 = vadd.s32 %v496, %v498
    %vm502 = vc.u32 %v496, %v498
    %v503 = vadd.s32 %v499, 1
    %v504 = vsel %vm502, %v503, %v499
    %v505 = vadd.s32 %v500, %v504
    %v506 = vadd.s32 %v505, 536870912
    %v507 = vshrl.u32 %v506, 30
    %v508 = vshll.u32 %v507, 30
    %v509 = vsub.s32 %v505, %v508
    %vm510 = vcmp.lt.s32.totalorder %v509, 0
    %v511 = vsub.s32 0, %v509
    %v512 = vsel %vm510, %v511, %v509
    %v513 = vclz %v512
    %v514 = vsub.s32 %v513, 2
    %vm515 = vcmp.gt.s32.totalorder 0, %v514
    %v516 = vsel %vm515, 0, %v514
    %v517 = vsub.s32 32, %v516
    %v518 = vshll.u32 %v509, %v516
    %v519 = vshrl.u32 %v501, %v517
    %v520 = vor.u32 %v518, %v519
    %v521 = vsub.s32 4294967266, %v516
    %v522 = vadd.s32 %v521, 127
    %v523 = vshll.u32 %v522, 23
    %v524 = vor.u32 4788187, %v523
    %v525 = vand.u32 2147483647, %v524
    %v527 = vcvt.s32.f32 %v520
    %v528 = vmul.f32 %v527, %v525
    %v529 = vxor.u32 %v528, 2147483648
    %v530 = vsel %vm447, %v529, %v528
    %v531 = vsub.s32 4, %v507
    %v532 = vsel %vm447, %v531, %v507
    %v533 = vsel %vm446, %v429, %v530
    %v534 = vsel %vm446, 0, %v532
    %v535 = vcosq.f32.pop %v533
    %v536 = vsinq.f32.pop %v533
    %vm537 = vweird.f32 %v429
    %v538 = vand.u32 %v534, 3
    %vm539 = vcmp.lt.s32.totalorder %v538, 2
    %vm540 = vcmp.eq.s32.totalorder %v538, 0
    %v541 = vxor.u32 %v536, 2147483648
    %v542 = vsel %vm540, %v535, %v541
    %vm543 = vcmp.eq.s32.totalorder %v538, 2
    %v544 = vxor.u32 %v535, 2147483648
    %v545 = vsel %vm543, %v544, %v536
    %v546 = vsel %vm539, %v542, %v545
    %v547 = vsel %vm537, nan, %v546
    %v548 = vand.u32 2147483647, %v430
    %vm549 = vcmp.le.f32.partialorder %v548, 0.7853982
    %vm550 = vcmp.lt.s32.totalorder %v430, 0
    %v551 = vand.u32 %v430, 2139095040
    %v552 = vshrl.u32 %v551, 23
    %v553 = vsub.s32 %v552, 127
    %v554 = vand.u32 2147483647, %v430
    %v555 = vand.u32 %v554, 8388607
    %v556 = vor.u32 %v555, 8388608
    %v557 = vsub.s32 0, %v556
    %v558 = vadd.s32 %v553, 1
    %vm559 = vcmp.gt.s32.totalorder %v558, 0
    %v560 = vsel %vm559, %v558, 0
    %v561 = vshrl.u32 %v560, 5
    %v562 = vand.u32 %v560, 31
    %v563 = vsub.s32 32, %v562
    %v564 = vshrl.u32 683565275, %v563
    %v565 = vshll.u32 683565275, %v562
    %v566 = vshrl.u32 2475754826, %v563
    %v567 = vor.u32 %v565, %v566
    %v568 = vshll.u32 2475754826, %v562
    %v569 = vshrl.u32 2131351028, %v563
    %v570 = vor.u32 %v568, %v569
    %v571 = vshll.u32 2131351028, %v562
    %v572 = vshrl.u32 2102212464, %v563
    %v573 = vor.u32 %v571, %v572
    %v574 = vshll.u32 2102212464, %v562
    %v575 = vshrl.u32 920167782, %v563
    %v576 = vor.u32 %v574, %v575
    %v577 = vshll.u32 920167782, %v562
    %v578 = vshrl.u32 1326507024, %v563
    %v579 = vor.u32 %v577, %v578
    %vm580 = vcmp.lt.s32.totalorder %v561, 1
    %vm581 = vcmp.lt.s32.totalorder %v561, 2
    %vm582 = vcmp.lt.s32.totalorder %v561, 3
    %vm583 = vcmp.lt.s32.totalorder %v561, 4
    %v584 = vsel %vm580, %v564, %v567
    %v585 = vsel %vm583, %v573, 2102212464
    %v586 = vsel %vm582, %v570, %v585
    %v587 = vsel %vm581, %v584, %v586
    %v588 = vsel %vm580, %v567, %v570
    %v589 = vsel %vm583, %v576, 920167782
    %v590 = vsel %vm582, %v573, %v589
    %v591 = vsel %vm581, %v588, %v590
    %v592 = vsel %vm580, %v570, %v573
    %v593 = vsel %vm583, %v579, 1326507024
    %v594 = vsel %vm582, %v576, %v593
    %v595 = vsel %vm581, %v592, %v594
    %v596 = vshll.u32 %v556, 8
    %v597 = vmul.u32.u64.compose %v596, %v595
    %v598 = vextract.low.u32 %v597
    %v599 = vextract.high.u32 %v597
    %v600 = vmul.u32.u64.compose %v596, %v591
    %v601 = vextract.low.u32 %v600
    %v602 = vextract.high.u32 %v600
    %v603 = vmul.u32 %v596, %v587
    %v604 = vadd.s32 %v599, %v601
    %vm605 = vc.u32 %v599, %v601
    %v606 = vadd.s32 %v602, 1
    %v607 = vsel %vm605, %v606, %v602
    %v608 = vadd.s32 %v603, %v607
    %v609 = vadd.s32 %v608, 536870912
    %v610 = vshrl.u32 %v609, 30
    %v611 = vshll.u32 %v610, 30
    %v612 = vsub.s32 %v608, %v611
    %vm613 = vcmp.lt.s32.totalorder %v612, 0
    %v614 = vsub.s32 0, %v612
    %v615 = vsel %vm613, %v614, %v612
    %v616 = vclz %v615
    %v617 = vsub.s32 %v616, 2
    %vm618 = vcmp.gt.s32.totalorder 0, %v617
    %v619 = vsel %vm618, 0, %v617
    %v620 = vsub.s32 32, %v619
    %v621 = vshll.u32 %v612, %v619
    %v622 = vshrl.u32 %v604, %v620
    %v623 = vor.u32 %v621, %v622
    %v624 = vsub.s32 4294967266, %v619
    %v625 = vadd.s32 %v624, 127
    %v626 = vshll.u32 %v625, 23
    %v627 = vor.u32 4788187, %v626
    %v628 = vand.u32 2147483647, %v627
    %v630 = vcvt.s32.f32 %v623
    %v631 = vmul.f32 %v630, %v628
    %v632 = vxor.u32 %v631, 2147483648
    %v633 = vsel %vm550, %v632, %v631
    %v634 = vsub.s32 4, %v610
    %v635 = vsel %vm550, %v634, %v610
    %v636 = vsel %vm549, %v430, %v633
    %v637 = vsel %vm549, 0, %v635
    %v638 = vcosq.f32.pop %v636
    %v639 = vsinq.f32.pop %v636
    %vm640 = vweird.f32 %v430
    %v641 = vand.u32 %v637, 3
    %vm642 = vcmp.lt.s32.totalorder %v641, 2
    %vm643 = vcmp.eq.s32.totalorder %v641, 0
    %v644 = vxor.u32 %v639, 2147483648
    %v645 = vsel %vm643, %v638, %v644
    %vm646 = vcmp.eq.s32.totalorder %v641, 2
    %v647 = vxor.u32 %v638, 2147483648
    %v648 = vsel %vm646, %v647, %v639
    %v649 = vsel %vm642, %v645, %v648
    %v650 = vsel %vm640, nan, %v649
    %v651 = vand.u32 2147483647, %v431
    %vm652 = vcmp.le.f32.partialorder %v651, 0.7853982
    %vm653 = vcmp.lt.s32.totalorder %v431, 0
    %v654 = vand.u32 %v431, 2139095040
    %v655 = vshrl.u32 %v654, 23
    %v656 = vsub.s32 %v655, 127
    %v657 = vand.u32 2147483647, %v431
    %v658 = vand.u32 %v657, 8388607
    %v659 = vor.u32 %v658, 8388608
    %v660 = vsub.s32 0, %v659
    %v661 = vadd.s32 %v656, 1
    %vm662 = vcmp.gt.s32.totalorder %v661, 0
    %v663 = vsel %vm662, %v661, 0
    %v664 = vshrl.u32 %v663, 5
    %v665 = vand.u32 %v663, 31
    %v666 = vsub.s32 32, %v665
    %v667 = vshrl.u32 683565275, %v666
    %v668 = vshll.u32 683565275, %v665
    %v669 = vshrl.u32 2475754826, %v666
    %v670 = vor.u32 %v668, %v669
    %v671 = vshll.u32 2475754826, %v665
    %v672 = vshrl.u32 2131351028, %v666
    %v673 = vor.u32 %v671, %v672
    %v674 = vshll.u32 2131351028, %v665
    %v675 = vshrl.u32 2102212464, %v666
    %v676 = vor.u32 %v674, %v675
    %v677 = vshll.u32 2102212464, %v665
    %v678 = vshrl.u32 920167782, %v666
    %v679 = vor.u32 %v677, %v678
    %v680 = vshll.u32 920167782, %v665
    %v681 = vshrl.u32 1326507024, %v666
    %v682 = vor.u32 %v680, %v681
    %vm683 = vcmp.lt.s32.totalorder %v664, 1
    %vm684 = vcmp.lt.s32.totalorder %v664, 2
    %vm685 = vcmp.lt.s32.totalorder %v664, 3
    %vm686 = vcmp.lt.s32.totalorder %v664, 4
    %v687 = vsel %vm683, %v667, %v670
    %v688 = vsel %vm686, %v676, 2102212464
    %v689 = vsel %vm685, %v673, %v688
    %v690 = vsel %vm684, %v687, %v689
    %v691 = vsel %vm683, %v670, %v673
    %v692 = vsel %vm686, %v679, 920167782
    %v693 = vsel %vm685, %v676, %v692
    %v694 = vsel %vm684, %v691, %v693
    %v695 = vsel %vm683, %v673, %v676
    %v696 = vsel %vm686, %v682, 1326507024
    %v697 = vsel %vm685, %v679, %v696
    %v698 = vsel %vm684, %v695, %v697
    %v699 = vshll.u32 %v659, 8
    %v700 = vmul.u32.u64.compose %v699, %v698
    %v701 = vextract.low.u32 %v700
    %v702 = vextract.high.u32 %v700
    %v703 = vmul.u32.u64.compose %v699, %v694
    %v704 = vextract.low.u32 %v703
    %v705 = vextract.high.u32 %v703
    %v706 = vmul.u32 %v699, %v690
    %v707 = vadd.s32 %v702, %v704
    %vm708 = vc.u32 %v702, %v704
    %v709 = vadd.s32 %v705, 1
    %v710 = vsel %vm708, %v709, %v705
    %v711 = vadd.s32 %v706, %v710
    %v712 = vadd.s32 %v711, 536870912
    %v713 = vshrl.u32 %v712, 30
    %v714 = vshll.u32 %v713, 30
    %v715 = vsub.s32 %v711, %v714
    %vm716 = vcmp.lt.s32.totalorder %v715, 0
    %v717 = vsub.s32 0, %v715
    %v718 = vsel %vm716, %v717, %v715
    %v719 = vclz %v718
    %v720 = vsub.s32 %v719, 2
    %vm721 = vcmp.gt.s32.totalorder 0, %v720
    %v722 = vsel %vm721, 0, %v720
    %v723 = vsub.s32 32, %v722
    %v724 = vshll.u32 %v715, %v722
    %v725 = vshrl.u32 %v707, %v723
    %v726 = vor.u32 %v724, %v725
    %v727 = vsub.s32 4294967266, %v722
    %v728 = vadd.s32 %v727, 127
    %v729 = vshll.u32 %v728, 23
    %v730 = vor.u32 4788187, %v729
    %v731 = vand.u32 2147483647, %v730
    %v733 = vcvt.s32.f32 %v726
    %v734 = vmul.f32 %v733, %v731
    %v735 = vxor.u32 %v734, 2147483648
    %v736 = vsel %vm653, %v735, %v734
    %v737 = vsub.s32 4, %v713
    %v738 = vsel %vm653, %v737, %v713
    %v739 = vsel %vm652, %v431, %v736
    %v740 = vsel %vm652, 0, %v738
    %v741 = vcosq.f32.pop %v739
    %v742 = vsinq.f32.pop %v739
    %vm743 = vweird.f32 %v431
    %v744 = vand.u32 %v740, 3
    %vm745 = vcmp.lt.s32.totalorder %v744, 2
    %vm746 = vcmp.eq.s32.totalorder %v744, 0
    %v747 = vxor.u32 %v742, 2147483648
    %v748 = vsel %vm746, %v741, %v747
    %vm749 = vcmp.eq.s32.totalorder %v744, 2
    %v750 = vxor.u32 %v741, 2147483648
    %v751 = vsel %vm749, %v750, %v742
    %v752 = vsel %vm745, %v748, %v751
    %v753 = vsel %vm743, nan, %v752
    %v754 = vand.u32 2147483647, %v432
    %vm755 = vcmp.le.f32.partialorder %v754, 0.7853982
    %vm756 = vcmp.lt.s32.totalorder %v432, 0
    %v757 = vand.u32 %v432, 2139095040
    %v758 = vshrl.u32 %v757, 23
    %v759 = vsub.s32 %v758, 127
    %v760 = vand.u32 2147483647, %v432
    %v761 = vand.u32 %v760, 8388607
    %v762 = vor.u32 %v761, 8388608
    %v763 = vsub.s32 0, %v762
    %v764 = vadd.s32 %v759, 1
    %vm765 = vcmp.gt.s32.totalorder %v764, 0
    %v766 = vsel %vm765, %v764, 0
    %v767 = vshrl.u32 %v766, 5
    %v768 = vand.u32 %v766, 31
    %v769 = vsub.s32 32, %v768
    %v770 = vshrl.u32 683565275, %v769
    %v771 = vshll.u32 683565275, %v768
    %v772 = vshrl.u32 2475754826, %v769
    %v773 = vor.u32 %v771, %v772
    %v774 = vshll.u32 2475754826, %v768
    %v775 = vshrl.u32 2131351028, %v769
    %v776 = vor.u32 %v774, %v775
    %v777 = vshll.u32 2131351028, %v768
    %v778 = vshrl.u32 2102212464, %v769
    %v779 = vor.u32 %v777, %v778
    %v780 = vshll.u32 2102212464, %v768
    %v781 = vshrl.u32 920167782, %v769
    %v782 = vor.u32 %v780, %v781
    %v783 = vshll.u32 920167782, %v768
    %v784 = vshrl.u32 1326507024, %v769
    %v785 = vor.u32 %v783, %v784
    %vm786 = vcmp.lt.s32.totalorder %v767, 1
    %vm787 = vcmp.lt.s32.totalorder %v767, 2
    %vm788 = vcmp.lt.s32.totalorder %v767, 3
    %vm789 = vcmp.lt.s32.totalorder %v767, 4
    %v790 = vsel %vm786, %v770, %v773
    %v791 = vsel %vm789, %v779, 2102212464
    %v792 = vsel %vm788, %v776, %v791
    %v793 = vsel %vm787, %v790, %v792
    %v794 = vsel %vm786, %v773, %v776
    %v795 = vsel %vm789, %v782, 920167782
    %v796 = vsel %vm788, %v779, %v795
    %v797 = vsel %vm787, %v794, %v796
    %v798 = vsel %vm786, %v776, %v779
    %v799 = vsel %vm789, %v785, 1326507024
    %v800 = vsel %vm788, %v782, %v799
    %v801 = vsel %vm787, %v798, %v800
    %v802 = vshll.u32 %v762, 8
    %v803 = vmul.u32.u64.compose %v802, %v801
    %v804 = vextract.low.u32 %v803
    %v805 = vextract.high.u32 %v803
    %v806 = vmul.u32.u64.compose %v802, %v797
    %v807 = vextract.low.u32 %v806
    %v808 = vextract.high.u32 %v806
    %v809 = vmul.u32 %v802, %v793
    %v810 = vadd.s32 %v805, %v807
    %vm811 = vc.u32 %v805, %v807
    %v812 = vadd.s32 %v808, 1
    %v813 = vsel %vm811, %v812, %v808
    %v814 = vadd.s32 %v809, %v813
    %v815 = vadd.s32 %v814, 536870912
    %v816 = vshrl.u32 %v815, 30
    %v817 = vshll.u32 %v816, 30
    %v818 = vsub.s32 %v814, %v817
    %vm819 = vcmp.lt.s32.totalorder %v818, 0
    %v820 = vsub.s32 0, %v818
    %v821 = vsel %vm819, %v820, %v818
    %v822 = vclz %v821
    %v823 = vsub.s32 %v822, 2
    %vm824 = vcmp.gt.s32.totalorder 0, %v823
    %v825 = vsel %vm824, 0, %v823
    %v826 = vsub.s32 32, %v825
    %v827 = vshll.u32 %v818, %v825
    %v828 = vshrl.u32 %v810, %v826
    %v829 = vor.u32 %v827, %v828
    %v830 = vsub.s32 4294967266, %v825
    %v831 = vadd.s32 %v830, 127
    %v832 = vshll.u32 %v831, 23
    %v833 = vor.u32 4788187, %v832
    %v834 = vand.u32 2147483647, %v833
    %v836 = vcvt.s32.f32 %v829
    %v837 = vmul.f32 %v836, %v834
    %v838 = vxor.u32 %v837, 2147483648
    %v839 = vsel %vm756, %v838, %v837
    %v840 = vsub.s32 4, %v816
    %v841 = vsel %vm756, %v840, %v816
    %v842 = vsel %vm755, %v432, %v839
    %v843 = vsel %vm755, 0, %v841
    %v844 = vcosq.f32.pop %v842
    %v845 = vsinq.f32.pop %v842
    %vm846 = vweird.f32 %v432
    %v847 = vand.u32 %v843, 3
    %vm848 = vcmp.lt.s32.totalorder %v847, 2
    %vm849 = vcmp.eq.s32.totalorder %v847, 0
    %v850 = vxor.u32 %v845, 2147483648
    %v851 = vsel %vm849, %v844, %v850
    %vm852 = vcmp.eq.s32.totalorder %v847, 2
    %v853 = vxor.u32 %v844, 2147483648
    %v854 = vsel %vm852, %v853, %v845
    %v855 = vsel %vm848, %v851, %v854
    %v856 = vsel %vm846, nan, %v855
    %v857 = vand.u32 2147483647, %v433
    %vm858 = vcmp.le.f32.partialorder %v857, 0.7853982
    %vm859 = vcmp.lt.s32.totalorder %v433, 0
    %v860 = vand.u32 %v433, 2139095040
    %v861 = vshrl.u32 %v860, 23
    %v862 = vsub.s32 %v861, 127
    %v863 = vand.u32 2147483647, %v433
    %v864 = vand.u32 %v863, 8388607
    %v865 = vor.u32 %v864, 8388608
    %v866 = vsub.s32 0, %v865
    %v867 = vadd.s32 %v862, 1
    %vm868 = vcmp.gt.s32.totalorder %v867, 0
    %v869 = vsel %vm868, %v867, 0
    %v870 = vshrl.u32 %v869, 5
    %v871 = vand.u32 %v869, 31
    %v872 = vsub.s32 32, %v871
    %v873 = vshrl.u32 683565275, %v872
    %v874 = vshll.u32 683565275, %v871
    %v875 = vshrl.u32 2475754826, %v872
    %v876 = vor.u32 %v874, %v875
    %v877 = vshll.u32 2475754826, %v871
    %v878 = vshrl.u32 2131351028, %v872
    %v879 = vor.u32 %v877, %v878
    %v880 = vshll.u32 2131351028, %v871
    %v881 = vshrl.u32 2102212464, %v872
    %v882 = vor.u32 %v880, %v881
    %v883 = vshll.u32 2102212464, %v871
    %v884 = vshrl.u32 920167782, %v872
    %v885 = vor.u32 %v883, %v884
    %v886 = vshll.u32 920167782, %v871
    %v887 = vshrl.u32 1326507024, %v872
    %v888 = vor.u32 %v886, %v887
    %vm889 = vcmp.lt.s32.totalorder %v870, 1
    %vm890 = vcmp.lt.s32.totalorder %v870, 2
    %vm891 = vcmp.lt.s32.totalorder %v870, 3
    %vm892 = vcmp.lt.s32.totalorder %v870, 4
    %v893 = vsel %vm889, %v873, %v876
    %v894 = vsel %vm892, %v882, 2102212464
    %v895 = vsel %vm891, %v879, %v894
    %v896 = vsel %vm890, %v893, %v895
    %v897 = vsel %vm889, %v876, %v879
    %v898 = vsel %vm892, %v885, 920167782
    %v899 = vsel %vm891, %v882, %v898
    %v900 = vsel %vm890, %v897, %v899
    %v901 = vsel %vm889, %v879, %v882
    %v902 = vsel %vm892, %v888, 1326507024
    %v903 = vsel %vm891, %v885, %v902
    %v904 = vsel %vm890, %v901, %v903
    %v905 = vshll.u32 %v865, 8
    %v906 = vmul.u32.u64.compose %v905, %v904
    %v907 = vextract.low.u32 %v906
    %v908 = vextract.high.u32 %v906
    %v909 = vmul.u32.u64.compose %v905, %v900
    %v910 = vextract.low.u32 %v909
    %v911 = vextract.high.u32 %v909
    %v912 = vmul.u32 %v905, %v896
    %v913 = vadd.s32 %v908, %v910
    %vm914 = vc.u32 %v908, %v910
    %v915 = vadd.s32 %v911, 1
    %v916 = vsel %vm914, %v915, %v911
    %v917 = vadd.s32 %v912, %v916
    %v918 = vadd.s32 %v917, 536870912
    %v919 = vshrl.u32 %v918, 30
    %v920 = vshll.u32 %v919, 30
    %v921 = vsub.s32 %v917, %v920
    %vm922 = vcmp.lt.s32.totalorder %v921, 0
    %v923 = vsub.s32 0, %v921
    %v924 = vsel %vm922, %v923, %v921
    %v925 = vclz %v924
    %v926 = vsub.s32 %v925, 2
    %vm927 = vcmp.gt.s32.totalorder 0, %v926
    %v928 = vsel %vm927, 0, %v926
    %v929 = vsub.s32 32, %v928
    %v930 = vshll.u32 %v921, %v928
    %v931 = vshrl.u32 %v913, %v929
    %v932 = vor.u32 %v930, %v931
    %v933 = vsub.s32 4294967266, %v928
    %v934 = vadd.s32 %v933, 127
    %v935 = vshll.u32 %v934, 23
    %v936 = vor.u32 4788187, %v935
    %v937 = vand.u32 2147483647, %v936
    %v939 = vcvt.s32.f32 %v932
    %v940 = vmul.f32 %v939, %v937
    %v941 = vxor.u32 %v940, 2147483648
    %v942 = vsel %vm859, %v941, %v940
    %v943 = vsub.s32 4, %v919
    %v944 = vsel %vm859, %v943, %v919
    %v945 = vsel %vm858, %v433, %v942
    %v946 = vsel %vm858, 0, %v944
    %v947 = vcosq.f32.pop %v945
    %v948 = vsinq.f32.pop %v945
    %vm949 = vweird.f32 %v433
    %v950 = vand.u32 %v946, 3
    %vm951 = vcmp.lt.s32.totalorder %v950, 2
    %vm952 = vcmp.eq.s32.totalorder %v950, 0
    %v953 = vxor.u32 %v948, 2147483648
    %v954 = vsel %vm952, %v947, %v953
    %vm955 = vcmp.eq.s32.totalorder %v950, 2
    %v956 = vxor.u32 %v947, 2147483648
    %v957 = vsel %vm955, %v956, %v948
    %v958 = vsel %vm951, %v954, %v957
    %v959 = vsel %vm949, nan, %v958
    %v960 = vand.u32 2147483647, %v434
    %vm961 = vcmp.le.f32.partialorder %v960, 0.7853982
    %vm962 = vcmp.lt.s32.totalorder %v434, 0
    %v963 = vand.u32 %v434, 2139095040
    %v964 = vshrl.u32 %v963, 23
    %v965 = vsub.s32 %v964, 127
    %v966 = vand.u32 2147483647, %v434
    %v967 = vand.u32 %v966, 8388607
    %v968 = vor.u32 %v967, 8388608
    %v969 = vsub.s32 0, %v968
    %v970 = vadd.s32 %v965, 1
    %vm971 = vcmp.gt.s32.totalorder %v970, 0
    %v972 = vsel %vm971, %v970, 0
    %v973 = vshrl.u32 %v972, 5
    %v974 = vand.u32 %v972, 31
    %v975 = vsub.s32 32, %v974
    %v976 = vshrl.u32 683565275, %v975
    %v977 = vshll.u32 683565275, %v974
    %v978 = vshrl.u32 2475754826, %v975
    %v979 = vor.u32 %v977, %v978
    %v980 = vshll.u32 2475754826, %v974
    %v981 = vshrl.u32 2131351028, %v975
    %v982 = vor.u32 %v980, %v981
    %v983 = vshll.u32 2131351028, %v974
    %v984 = vshrl.u32 2102212464, %v975
    %v985 = vor.u32 %v983, %v984
    %v986 = vshll.u32 2102212464, %v974
    %v987 = vshrl.u32 920167782, %v975
    %v988 = vor.u32 %v986, %v987
    %v989 = vshll.u32 920167782, %v974
    %v990 = vshrl.u32 1326507024, %v975
    %v991 = vor.u32 %v989, %v990
    %vm992 = vcmp.lt.s32.totalorder %v973, 1
    %vm993 = vcmp.lt.s32.totalorder %v973, 2
    %vm994 = vcmp.lt.s32.totalorder %v973, 3
    %vm995 = vcmp.lt.s32.totalorder %v973, 4
    %v996 = vsel %vm992, %v976, %v979
    %v997 = vsel %vm995, %v985, 2102212464
    %v998 = vsel %vm994, %v982, %v997
    %v999 = vsel %vm993, %v996, %v998
    %v1000 = vsel %vm992, %v979, %v982
    %v1001 = vsel %vm995, %v988, 920167782
    %v1002 = vsel %vm994, %v985, %v1001
    %v1003 = vsel %vm993, %v1000, %v1002
    %v1004 = vsel %vm992, %v982, %v985
    %v1005 = vsel %vm995, %v991, 1326507024
    %v1006 = vsel %vm994, %v988, %v1005
    %v1007 = vsel %vm993, %v1004, %v1006
    %v1008 = vshll.u32 %v968, 8
    %v1009 = vmul.u32.u64.compose %v1008, %v1007
    %v1010 = vextract.low.u32 %v1009
    %v1011 = vextract.high.u32 %v1009
    %v1012 = vmul.u32.u64.compose %v1008, %v1003
    %v1013 = vextract.low.u32 %v1012
    %v1014 = vextract.high.u32 %v1012
    %v1015 = vmul.u32 %v1008, %v999
    %v1016 = vadd.s32 %v1011, %v1013
    %vm1017 = vc.u32 %v1011, %v1013
    %v1018 = vadd.s32 %v1014, 1
    %v1019 = vsel %vm1017, %v1018, %v1014
    %v1020 = vadd.s32 %v1015, %v1019
    %v1021 = vadd.s32 %v1020, 536870912
    %v1022 = vshrl.u32 %v1021, 30
    %v1023 = vshll.u32 %v1022, 30
    %v1024 = vsub.s32 %v1020, %v1023
    %vm1025 = vcmp.lt.s32.totalorder %v1024, 0
    %v1026 = vsub.s32 0, %v1024
    %v1027 = vsel %vm1025, %v1026, %v1024
    %v1028 = vclz %v1027
    %v1029 = vsub.s32 %v1028, 2
    %vm1030 = vcmp.gt.s32.totalorder 0, %v1029
    %v1031 = vsel %vm1030, 0, %v1029
    %v1032 = vsub.s32 32, %v1031
    %v1033 = vshll.u32 %v1024, %v1031
    %v1034 = vshrl.u32 %v1016, %v1032
    %v1035 = vor.u32 %v1033, %v1034
    %v1036 = vsub.s32 4294967266, %v1031
    %v1037 = vadd.s32 %v1036, 127
    %v1038 = vshll.u32 %v1037, 23
    %v1039 = vor.u32 4788187, %v1038
    %v1040 = vand.u32 2147483647, %v1039
    %v1042 = vcvt.s32.f32 %v1035
    %v1043 = vmul.f32 %v1042, %v1040
    %v1044 = vxor.u32 %v1043, 2147483648
    %v1045 = vsel %vm962, %v1044, %v1043
    %v1046 = vsub.s32 4, %v1022
    %v1047 = vsel %vm962, %v1046, %v1022
    %v1048 = vsel %vm961, %v434, %v1045
    %v1049 = vsel %vm961, 0, %v1047
    %v1050 = vcosq.f32.pop %v1048
    %v1051 = vsinq.f32.pop %v1048
    %vm1052 = vweird.f32 %v434
    %v1053 = vand.u32 %v1049, 3
    %vm1054 = vcmp.lt.s32.totalorder %v1053, 2
    %vm1055 = vcmp.eq.s32.totalorder %v1053, 0
    %v1056 = vxor.u32 %v1051, 2147483648
    %v1057 = vsel %vm1055, %v1050, %v1056
    %vm1058 = vcmp.eq.s32.totalorder %v1053, 2
    %v1059 = vxor.u32 %v1050, 2147483648
    %v1060 = vsel %vm1058, %v1059, %v1051
    %v1061 = vsel %vm1054, %v1057, %v1060
    %v1062 = vsel %vm1052, nan, %v1061
    %v1063 = vand.u32 2147483647, %v435
    %vm1064 = vcmp.le.f32.partialorder %v1063, 0.7853982
    %vm1065 = vcmp.lt.s32.totalorder %v435, 0
    %v1066 = vand.u32 %v435, 2139095040
    %v1067 = vshrl.u32 %v1066, 23
    %v1068 = vsub.s32 %v1067, 127
    %v1069 = vand.u32 2147483647, %v435
    %v1070 = vand.u32 %v1069, 8388607
    %v1071 = vor.u32 %v1070, 8388608
    %v1072 = vsub.s32 0, %v1071
    %v1073 = vadd.s32 %v1068, 1
    %vm1074 = vcmp.gt.s32.totalorder %v1073, 0
    %v1075 = vsel %vm1074, %v1073, 0
    %v1076 = vshrl.u32 %v1075, 5
    %v1077 = vand.u32 %v1075, 31
    %v1078 = vsub.s32 32, %v1077
    %v1079 = vshrl.u32 683565275, %v1078
    %v1080 = vshll.u32 683565275, %v1077
    %v1081 = vshrl.u32 2475754826, %v1078
    %v1082 = vor.u32 %v1080, %v1081
    %v1083 = vshll.u32 2475754826, %v1077
    %v1084 = vshrl.u32 2131351028, %v1078
    %v1085 = vor.u32 %v1083, %v1084
    %v1086 = vshll.u32 2131351028, %v1077
    %v1087 = vshrl.u32 2102212464, %v1078
    %v1088 = vor.u32 %v1086, %v1087
    %v1089 = vshll.u32 2102212464, %v1077
    %v1090 = vshrl.u32 920167782, %v1078
    %v1091 = vor.u32 %v1089, %v1090
    %v1092 = vshll.u32 920167782, %v1077
    %v1093 = vshrl.u32 1326507024, %v1078
    %v1094 = vor.u32 %v1092, %v1093
    %vm1095 = vcmp.lt.s32.totalorder %v1076, 1
    %vm1096 = vcmp.lt.s32.totalorder %v1076, 2
    %vm1097 = vcmp.lt.s32.totalorder %v1076, 3
    %vm1098 = vcmp.lt.s32.totalorder %v1076, 4
    %v1099 = vsel %vm1095, %v1079, %v1082
    %v1100 = vsel %vm1098, %v1088, 2102212464
    %v1101 = vsel %vm1097, %v1085, %v1100
    %v1102 = vsel %vm1096, %v1099, %v1101
    %v1103 = vsel %vm1095, %v1082, %v1085
    %v1104 = vsel %vm1098, %v1091, 920167782
    %v1105 = vsel %vm1097, %v1088, %v1104
    %v1106 = vsel %vm1096, %v1103, %v1105
    %v1107 = vsel %vm1095, %v1085, %v1088
    %v1108 = vsel %vm1098, %v1094, 1326507024
    %v1109 = vsel %vm1097, %v1091, %v1108
    %v1110 = vsel %vm1096, %v1107, %v1109
    %v1111 = vshll.u32 %v1071, 8
    %v1112 = vmul.u32.u64.compose %v1111, %v1110
    %v1113 = vextract.low.u32 %v1112
    %v1114 = vextract.high.u32 %v1112
    %v1115 = vmul.u32.u64.compose %v1111, %v1106
    %v1116 = vextract.low.u32 %v1115
    %v1117 = vextract.high.u32 %v1115
    %v1118 = vmul.u32 %v1111, %v1102
    %v1119 = vadd.s32 %v1114, %v1116
    %vm1120 = vc.u32 %v1114, %v1116
    %v1121 = vadd.s32 %v1117, 1
    %v1122 = vsel %vm1120, %v1121, %v1117
    %v1123 = vadd.s32 %v1118, %v1122
    %v1124 = vadd.s32 %v1123, 536870912
    %v1125 = vshrl.u32 %v1124, 30
    %v1126 = vshll.u32 %v1125, 30
    %v1127 = vsub.s32 %v1123, %v1126
    %vm1128 = vcmp.lt.s32.totalorder %v1127, 0
    %v1129 = vsub.s32 0, %v1127
    %v1130 = vsel %vm1128, %v1129, %v1127
    %v1131 = vclz %v1130
    %v1132 = vsub.s32 %v1131, 2
    %vm1133 = vcmp.gt.s32.totalorder 0, %v1132
    %v1134 = vsel %vm1133, 0, %v1132
    %v1135 = vsub.s32 32, %v1134
    %v1136 = vshll.u32 %v1127, %v1134
    %v1137 = vshrl.u32 %v1119, %v1135
    %v1138 = vor.u32 %v1136, %v1137
    %v1139 = vsub.s32 4294967266, %v1134
    %v1140 = vadd.s32 %v1139, 127
    %v1141 = vshll.u32 %v1140, 23
    %v1142 = vor.u32 4788187, %v1141
    %v1143 = vand.u32 2147483647, %v1142
    %v1145 = vcvt.s32.f32 %v1138
    %v1146 = vmul.f32 %v1145, %v1143
    %v1147 = vxor.u32 %v1146, 2147483648
    %v1148 = vsel %vm1065, %v1147, %v1146
    %v1149 = vsub.s32 4, %v1125
    %v1150 = vsel %vm1065, %v1149, %v1125
    %v1151 = vsel %vm1064, %v435, %v1148
    %v1152 = vsel %vm1064, 0, %v1150
    %v1153 = vcosq.f32.pop %v1151
    %v1154 = vsinq.f32.pop %v1151
    %vm1155 = vweird.f32 %v435
    %v1156 = vand.u32 %v1152, 3
    %vm1157 = vcmp.lt.s32.totalorder %v1156, 2
    %vm1158 = vcmp.eq.s32.totalorder %v1156, 0
    %v1159 = vxor.u32 %v1154, 2147483648
    %v1160 = vsel %vm1158, %v1153, %v1159
    %vm1161 = vcmp.eq.s32.totalorder %v1156, 2
    %v1162 = vxor.u32 %v1153, 2147483648
    %v1163 = vsel %vm1161, %v1162, %v1154
    %v1164 = vsel %vm1157, %v1160, %v1163
    %v1165 = vsel %vm1155, nan, %v1164
    %v1166 = vand.u32 2147483647, %v436
    %vm1167 = vcmp.le.f32.partialorder %v1166, 0.7853982
    %vm1168 = vcmp.lt.s32.totalorder %v436, 0
    %v1169 = vand.u32 %v436, 2139095040
    %v1170 = vshrl.u32 %v1169, 23
    %v1171 = vsub.s32 %v1170, 127
    %v1172 = vand.u32 2147483647, %v436
    %v1173 = vand.u32 %v1172, 8388607
    %v1174 = vor.u32 %v1173, 8388608
    %v1175 = vsub.s32 0, %v1174
    %v1176 = vadd.s32 %v1171, 1
    %vm1177 = vcmp.gt.s32.totalorder %v1176, 0
    %v1178 = vsel %vm1177, %v1176, 0
    %v1179 = vshrl.u32 %v1178, 5
    %v1180 = vand.u32 %v1178, 31
    %v1181 = vsub.s32 32, %v1180
    %v1182 = vshrl.u32 683565275, %v1181
    %v1183 = vshll.u32 683565275, %v1180
    %v1184 = vshrl.u32 2475754826, %v1181
    %v1185 = vor.u32 %v1183, %v1184
    %v1186 = vshll.u32 2475754826, %v1180
    %v1187 = vshrl.u32 2131351028, %v1181
    %v1188 = vor.u32 %v1186, %v1187
    %v1189 = vshll.u32 2131351028, %v1180
    %v1190 = vshrl.u32 2102212464, %v1181
    %v1191 = vor.u32 %v1189, %v1190
    %v1192 = vshll.u32 2102212464, %v1180
    %v1193 = vshrl.u32 920167782, %v1181
    %v1194 = vor.u32 %v1192, %v1193
    %v1195 = vshll.u32 920167782, %v1180
    %v1196 = vshrl.u32 1326507024, %v1181
    %v1197 = vor.u32 %v1195, %v1196
    %vm1198 = vcmp.lt.s32.totalorder %v1179, 1
    %vm1199 = vcmp.lt.s32.totalorder %v1179, 2
    %vm1200 = vcmp.lt.s32.totalorder %v1179, 3
    %vm1201 = vcmp.lt.s32.totalorder %v1179, 4
    %v1202 = vsel %vm1198, %v1182, %v1185
    %v1203 = vsel %vm1201, %v1191, 2102212464
    %v1204 = vsel %vm1200, %v1188, %v1203
    %v1205 = vsel %vm1199, %v1202, %v1204
    %v1206 = vsel %vm1198, %v1185, %v1188
    %v1207 = vsel %vm1201, %v1194, 920167782
    %v1208 = vsel %vm1200, %v1191, %v1207
    %v1209 = vsel %vm1199, %v1206, %v1208
    %v1210 = vsel %vm1198, %v1188, %v1191
    %v1211 = vsel %vm1201, %v1197, 1326507024
    %v1212 = vsel %vm1200, %v1194, %v1211
    %v1213 = vsel %vm1199, %v1210, %v1212
    %v1214 = vshll.u32 %v1174, 8
    %v1215 = vmul.u32.u64.compose %v1214, %v1213
    %v1216 = vextract.low.u32 %v1215
    %v1217 = vextract.high.u32 %v1215
    %v1218 = vmul.u32.u64.compose %v1214, %v1209
    %v1219 = vextract.low.u32 %v1218
    %v1220 = vextract.high.u32 %v1218
    %v1221 = vmul.u32 %v1214, %v1205
    %v1222 = vadd.s32 %v1217, %v1219
    %vm1223 = vc.u32 %v1217, %v1219
    %v1224 = vadd.s32 %v1220, 1
    %v1225 = vsel %vm1223, %v1224, %v1220
    %v1226 = vadd.s32 %v1221, %v1225
    %v1227 = vadd.s32 %v1226, 536870912
    %v1228 = vshrl.u32 %v1227, 30
    %v1229 = vshll.u32 %v1228, 30
    %v1230 = vsub.s32 %v1226, %v1229
    %vm1231 = vcmp.lt.s32.totalorder %v1230, 0
    %v1232 = vsub.s32 0, %v1230
    %v1233 = vsel %vm1231, %v1232, %v1230
    %v1234 = vclz %v1233
    %v1235 = vsub.s32 %v1234, 2
    %vm1236 = vcmp.gt.s32.totalorder 0, %v1235
    %v1237 = vsel %vm1236, 0, %v1235
    %v1238 = vsub.s32 32, %v1237
    %v1239 = vshll.u32 %v1230, %v1237
    %v1240 = vshrl.u32 %v1222, %v1238
    %v1241 = vor.u32 %v1239, %v1240
    %v1242 = vsub.s32 4294967266, %v1237
    %v1243 = vadd.s32 %v1242, 127
    %v1244 = vshll.u32 %v1243, 23
    %v1245 = vor.u32 4788187, %v1244
    %v1246 = vand.u32 2147483647, %v1245
    %v1248 = vcvt.s32.f32 %v1241
    %v1249 = vmul.f32 %v1248, %v1246
    %v1250 = vxor.u32 %v1249, 2147483648
    %v1251 = vsel %vm1168, %v1250, %v1249
    %v1252 = vsub.s32 4, %v1228
    %v1253 = vsel %vm1168, %v1252, %v1228
    %v1254 = vsel %vm1167, %v436, %v1251
    %v1255 = vsel %vm1167, 0, %v1253
    %v1256 = vcosq.f32.pop %v1254
    %v1257 = vsinq.f32.pop %v1254
    %vm1258 = vweird.f32 %v436
    %v1259 = vand.u32 %v1255, 3
    %vm1260 = vcmp.lt.s32.totalorder %v1259, 2
    %vm1261 = vcmp.eq.s32.totalorder %v1259, 0
    %v1262 = vxor.u32 %v1257, 2147483648
    %v1263 = vsel %vm1261, %v1256, %v1262
    %vm1264 = vcmp.eq.s32.totalorder %v1259, 2
    %v1265 = vxor.u32 %v1256, 2147483648
    %v1266 = vsel %vm1264, %v1265, %v1257
    %v1267 = vsel %vm1260, %v1263, %v1266
    %v1268 = vsel %vm1258, nan, %v1267
    %v1269 = vand.u32 2147483647, %v437
    %vm1270 = vcmp.le.f32.partialorder %v1269, 0.7853982
    %vm1271 = vcmp.lt.s32.totalorder %v437, 0
    %v1272 = vand.u32 %v437, 2139095040
    %v1273 = vshrl.u32 %v1272, 23
    %v1274 = vsub.s32 %v1273, 127
    %v1275 = vand.u32 2147483647, %v437
    %v1276 = vand.u32 %v1275, 8388607
    %v1277 = vor.u32 %v1276, 8388608
    %v1278 = vsub.s32 0, %v1277
    %v1279 = vadd.s32 %v1274, 1
    %vm1280 = vcmp.gt.s32.totalorder %v1279, 0
    %v1281 = vsel %vm1280, %v1279, 0
    %v1282 = vshrl.u32 %v1281, 5
    %v1283 = vand.u32 %v1281, 31
    %v1284 = vsub.s32 32, %v1283
    %v1285 = vshrl.u32 683565275, %v1284
    %v1286 = vshll.u32 683565275, %v1283
    %v1287 = vshrl.u32 2475754826, %v1284
    %v1288 = vor.u32 %v1286, %v1287
    %v1289 = vshll.u32 2475754826, %v1283
    %v1290 = vshrl.u32 2131351028, %v1284
    %v1291 = vor.u32 %v1289, %v1290
    %v1292 = vshll.u32 2131351028, %v1283
    %v1293 = vshrl.u32 2102212464, %v1284
    %v1294 = vor.u32 %v1292, %v1293
    %v1295 = vshll.u32 2102212464, %v1283
    %v1296 = vshrl.u32 920167782, %v1284
    %v1297 = vor.u32 %v1295, %v1296
    %v1298 = vshll.u32 920167782, %v1283
    %v1299 = vshrl.u32 1326507024, %v1284
    %v1300 = vor.u32 %v1298, %v1299
    %vm1301 = vcmp.lt.s32.totalorder %v1282, 1
    %vm1302 = vcmp.lt.s32.totalorder %v1282, 2
    %vm1303 = vcmp.lt.s32.totalorder %v1282, 3
    %vm1304 = vcmp.lt.s32.totalorder %v1282, 4
    %v1305 = vsel %vm1301, %v1285, %v1288
    %v1306 = vsel %vm1304, %v1294, 2102212464
    %v1307 = vsel %vm1303, %v1291, %v1306
    %v1308 = vsel %vm1302, %v1305, %v1307
    %v1309 = vsel %vm1301, %v1288, %v1291
    %v1310 = vsel %vm1304, %v1297, 920167782
    %v1311 = vsel %vm1303, %v1294, %v1310
    %v1312 = vsel %vm1302, %v1309, %v1311
    %v1313 = vsel %vm1301, %v1291, %v1294
    %v1314 = vsel %vm1304, %v1300, 1326507024
    %v1315 = vsel %vm1303, %v1297, %v1314
    %v1316 = vsel %vm1302, %v1313, %v1315
    %v1317 = vshll.u32 %v1277, 8
    %v1318 = vmul.u32.u64.compose %v1317, %v1316
    %v1319 = vextract.low.u32 %v1318
    %v1320 = vextract.high.u32 %v1318
    %v1321 = vmul.u32.u64.compose %v1317, %v1312
    %v1322 = vextract.low.u32 %v1321
    %v1323 = vextract.high.u32 %v1321
    %v1324 = vmul.u32 %v1317, %v1308
    %v1325 = vadd.s32 %v1320, %v1322
    %vm1326 = vc.u32 %v1320, %v1322
    %v1327 = vadd.s32 %v1323, 1
    %v1328 = vsel %vm1326, %v1327, %v1323
    %v1329 = vadd.s32 %v1324, %v1328
    %v1330 = vadd.s32 %v1329, 536870912
    %v1331 = vshrl.u32 %v1330, 30
    %v1332 = vshll.u32 %v1331, 30
    %v1333 = vsub.s32 %v1329, %v1332
    %vm1334 = vcmp.lt.s32.totalorder %v1333, 0
    %v1335 = vsub.s32 0, %v1333
    %v1336 = vsel %vm1334, %v1335, %v1333
    %v1337 = vclz %v1336
    %v1338 = vsub.s32 %v1337, 2
    %vm1339 = vcmp.gt.s32.totalorder 0, %v1338
    %v1340 = vsel %vm1339, 0, %v1338
    %v1341 = vsub.s32 32, %v1340
    %v1342 = vshll.u32 %v1333, %v1340
    %v1343 = vshrl.u32 %v1325, %v1341
    %v1344 = vor.u32 %v1342, %v1343
    %v1345 = vsub.s32 4294967266, %v1340
    %v1346 = vadd.s32 %v1345, 127
    %v1347 = vshll.u32 %v1346, 23
    %v1348 = vor.u32 4788187, %v1347
    %v1349 = vand.u32 2147483647, %v1348
    %v1351 = vcvt.s32.f32 %v1344
    %v1352 = vmul.f32 %v1351, %v1349
    %v1353 = vxor.u32 %v1352, 2147483648
    %v1354 = vsel %vm1271, %v1353, %v1352
    %v1355 = vsub.s32 4, %v1331
    %v1356 = vsel %vm1271, %v1355, %v1331
    %v1357 = vsel %vm1270, %v437, %v1354
    %v1358 = vsel %vm1270, 0, %v1356
    %v1359 = vcosq.f32.pop %v1357
    %v1360 = vsinq.f32.pop %v1357
    %vm1361 = vweird.f32 %v437
    %v1362 = vand.u32 %v1358, 3
    %vm1363 = vcmp.lt.s32.totalorder %v1362, 2
    %vm1364 = vcmp.eq.s32.totalorder %v1362, 0
    %v1365 = vxor.u32 %v1360, 2147483648
    %v1366 = vsel %vm1364, %v1359, %v1365
    %vm1367 = vcmp.eq.s32.totalorder %v1362, 2
    %v1368 = vxor.u32 %v1359, 2147483648
    %v1369 = vsel %vm1367, %v1368, %v1360
    %v1370 = vsel %vm1363, %v1366, %v1369
    %v1371 = vsel %vm1361, nan, %v1370
    %v1372 = vand.u32 2147483647, %v438
    %vm1373 = vcmp.le.f32.partialorder %v1372, 0.7853982
    %vm1374 = vcmp.lt.s32.totalorder %v438, 0
    %v1375 = vand.u32 %v438, 2139095040
    %v1376 = vshrl.u32 %v1375, 23
    %v1377 = vsub.s32 %v1376, 127
    %v1378 = vand.u32 2147483647, %v438
    %v1379 = vand.u32 %v1378, 8388607
    %v1380 = vor.u32 %v1379, 8388608
    %v1381 = vsub.s32 0, %v1380
    %v1382 = vadd.s32 %v1377, 1
    %vm1383 = vcmp.gt.s32.totalorder %v1382, 0
    %v1384 = vsel %vm1383, %v1382, 0
    %v1385 = vshrl.u32 %v1384, 5
    %v1386 = vand.u32 %v1384, 31
    %v1387 = vsub.s32 32, %v1386
    %v1388 = vshrl.u32 683565275, %v1387
    %v1389 = vshll.u32 683565275, %v1386
    %v1390 = vshrl.u32 2475754826, %v1387
    %v1391 = vor.u32 %v1389, %v1390
    %v1392 = vshll.u32 2475754826, %v1386
    %v1393 = vshrl.u32 2131351028, %v1387
    %v1394 = vor.u32 %v1392, %v1393
    %v1395 = vshll.u32 2131351028, %v1386
    %v1396 = vshrl.u32 2102212464, %v1387
    %v1397 = vor.u32 %v1395, %v1396
    %v1398 = vshll.u32 2102212464, %v1386
    %v1399 = vshrl.u32 920167782, %v1387
    %v1400 = vor.u32 %v1398, %v1399
    %v1401 = vshll.u32 920167782, %v1386
    %v1402 = vshrl.u32 1326507024, %v1387
    %v1403 = vor.u32 %v1401, %v1402
    %vm1404 = vcmp.lt.s32.totalorder %v1385, 1
    %vm1405 = vcmp.lt.s32.totalorder %v1385, 2
    %vm1406 = vcmp.lt.s32.totalorder %v1385, 3
    %vm1407 = vcmp.lt.s32.totalorder %v1385, 4
    %v1408 = vsel %vm1404, %v1388, %v1391
    %v1409 = vsel %vm1407, %v1397, 2102212464
    %v1410 = vsel %vm1406, %v1394, %v1409
    %v1411 = vsel %vm1405, %v1408, %v1410
    %v1412 = vsel %vm1404, %v1391, %v1394
    %v1413 = vsel %vm1407, %v1400, 920167782
    %v1414 = vsel %vm1406, %v1397, %v1413
    %v1415 = vsel %vm1405, %v1412, %v1414
    %v1416 = vsel %vm1404, %v1394, %v1397
    %v1417 = vsel %vm1407, %v1403, 1326507024
    %v1418 = vsel %vm1406, %v1400, %v1417
    %v1419 = vsel %vm1405, %v1416, %v1418
    %v1420 = vshll.u32 %v1380, 8
    %v1421 = vmul.u32.u64.compose %v1420, %v1419
    %v1422 = vextract.low.u32 %v1421
    %v1423 = vextract.high.u32 %v1421
    %v1424 = vmul.u32.u64.compose %v1420, %v1415
    %v1425 = vextract.low.u32 %v1424
    %v1426 = vextract.high.u32 %v1424
    %v1427 = vmul.u32 %v1420, %v1411
    %v1428 = vadd.s32 %v1423, %v1425
    %vm1429 = vc.u32 %v1423, %v1425
    %v1430 = vadd.s32 %v1426, 1
    %v1431 = vsel %vm1429, %v1430, %v1426
    %v1432 = vadd.s32 %v1427, %v1431
    %v1433 = vadd.s32 %v1432, 536870912
    %v1434 = vshrl.u32 %v1433, 30
    %v1435 = vshll.u32 %v1434, 30
    %v1436 = vsub.s32 %v1432, %v1435
    %vm1437 = vcmp.lt.s32.totalorder %v1436, 0
    %v1438 = vsub.s32 0, %v1436
    %v1439 = vsel %vm1437, %v1438, %v1436
    %v1440 = vclz %v1439
    %v1441 = vsub.s32 %v1440, 2
    %vm1442 = vcmp.gt.s32.totalorder 0, %v1441
    %v1443 = vsel %vm1442, 0, %v1441
    %v1444 = vsub.s32 32, %v1443
    %v1445 = vshll.u32 %v1436, %v1443
    %v1446 = vshrl.u32 %v1428, %v1444
    %v1447 = vor.u32 %v1445, %v1446
    %v1448 = vsub.s32 4294967266, %v1443
    %v1449 = vadd.s32 %v1448, 127
    %v1450 = vshll.u32 %v1449, 23
    %v1451 = vor.u32 4788187, %v1450
    %v1452 = vand.u32 2147483647, %v1451
    %v1454 = vcvt.s32.f32 %v1447
    %v1455 = vmul.f32 %v1454, %v1452
    %v1456 = vxor.u32 %v1455, 2147483648
    %v1457 = vsel %vm1374, %v1456, %v1455
    %v1458 = vsub.s32 4, %v1434
    %v1459 = vsel %vm1374, %v1458, %v1434
    %v1460 = vsel %vm1373, %v438, %v1457
    %v1461 = vsel %vm1373, 0, %v1459
    %v1462 = vcosq.f32.pop %v1460
    %v1463 = vsinq.f32.pop %v1460
    %vm1464 = vweird.f32 %v438
    %v1465 = vand.u32 %v1461, 3
    %vm1466 = vcmp.lt.s32.totalorder %v1465, 2
    %vm1467 = vcmp.eq.s32.totalorder %v1465, 0
    %v1468 = vxor.u32 %v1463, 2147483648
    %v1469 = vsel %vm1467, %v1462, %v1468
    %vm1470 = vcmp.eq.s32.totalorder %v1465, 2
    %v1471 = vxor.u32 %v1462, 2147483648
    %v1472 = vsel %vm1470, %v1471, %v1463
    %v1473 = vsel %vm1466, %v1469, %v1472
    %v1474 = vsel %vm1464, nan, %v1473
    %v1475 = vand.u32 2147483647, %v439
    %vm1476 = vcmp.le.f32.partialorder %v1475, 0.7853982
    %vm1477 = vcmp.lt.s32.totalorder %v439, 0
    %v1478 = vand.u32 %v439, 2139095040
    %v1479 = vshrl.u32 %v1478, 23
    %v1480 = vsub.s32 %v1479, 127
    %v1481 = vand.u32 2147483647, %v439
    %v1482 = vand.u32 %v1481, 8388607
    %v1483 = vor.u32 %v1482, 8388608
    %v1484 = vsub.s32 0, %v1483
    %v1485 = vadd.s32 %v1480, 1
    %vm1486 = vcmp.gt.s32.totalorder %v1485, 0
    %v1487 = vsel %vm1486, %v1485, 0
    %v1488 = vshrl.u32 %v1487, 5
    %v1489 = vand.u32 %v1487, 31
    %v1490 = vsub.s32 32, %v1489
    %v1491 = vshrl.u32 683565275, %v1490
    %v1492 = vshll.u32 683565275, %v1489
    %v1493 = vshrl.u32 2475754826, %v1490
    %v1494 = vor.u32 %v1492, %v1493
    %v1495 = vshll.u32 2475754826, %v1489
    %v1496 = vshrl.u32 2131351028, %v1490
    %v1497 = vor.u32 %v1495, %v1496
    %v1498 = vshll.u32 2131351028, %v1489
    %v1499 = vshrl.u32 2102212464, %v1490
    %v1500 = vor.u32 %v1498, %v1499
    %v1501 = vshll.u32 2102212464, %v1489
    %v1502 = vshrl.u32 920167782, %v1490
    %v1503 = vor.u32 %v1501, %v1502
    %v1504 = vshll.u32 920167782, %v1489
    %v1505 = vshrl.u32 1326507024, %v1490
    %v1506 = vor.u32 %v1504, %v1505
    %vm1507 = vcmp.lt.s32.totalorder %v1488, 1
    %vm1508 = vcmp.lt.s32.totalorder %v1488, 2
    %vm1509 = vcmp.lt.s32.totalorder %v1488, 3
    %vm1510 = vcmp.lt.s32.totalorder %v1488, 4
    %v1511 = vsel %vm1507, %v1491, %v1494
    %v1512 = vsel %vm1510, %v1500, 2102212464
    %v1513 = vsel %vm1509, %v1497, %v1512
    %v1514 = vsel %vm1508, %v1511, %v1513
    %v1515 = vsel %vm1507, %v1494, %v1497
    %v1516 = vsel %vm1510, %v1503, 920167782
    %v1517 = vsel %vm1509, %v1500, %v1516
    %v1518 = vsel %vm1508, %v1515, %v1517
    %v1519 = vsel %vm1507, %v1497, %v1500
    %v1520 = vsel %vm1510, %v1506, 1326507024
    %v1521 = vsel %vm1509, %v1503, %v1520
    %v1522 = vsel %vm1508, %v1519, %v1521
    %v1523 = vshll.u32 %v1483, 8
    %v1524 = vmul.u32.u64.compose %v1523, %v1522
    %v1525 = vextract.low.u32 %v1524
    %v1526 = vextract.high.u32 %v1524
    %v1527 = vmul.u32.u64.compose %v1523, %v1518
    %v1528 = vextract.low.u32 %v1527
    %v1529 = vextract.high.u32 %v1527
    %v1530 = vmul.u32 %v1523, %v1514
    %v1531 = vadd.s32 %v1526, %v1528
    %vm1532 = vc.u32 %v1526, %v1528
    %v1533 = vadd.s32 %v1529, 1
    %v1534 = vsel %vm1532, %v1533, %v1529
    %v1535 = vadd.s32 %v1530, %v1534
    %v1536 = vadd.s32 %v1535, 536870912
    %v1537 = vshrl.u32 %v1536, 30
    %v1538 = vshll.u32 %v1537, 30
    %v1539 = vsub.s32 %v1535, %v1538
    %vm1540 = vcmp.lt.s32.totalorder %v1539, 0
    %v1541 = vsub.s32 0, %v1539
    %v1542 = vsel %vm1540, %v1541, %v1539
    %v1543 = vclz %v1542
    %v1544 = vsub.s32 %v1543, 2
    %vm1545 = vcmp.gt.s32.totalorder 0, %v1544
    %v1546 = vsel %vm1545, 0, %v1544
    %v1547 = vsub.s32 32, %v1546
    %v1548 = vshll.u32 %v1539, %v1546
    %v1549 = vshrl.u32 %v1531, %v1547
    %v1550 = vor.u32 %v1548, %v1549
    %v1551 = vsub.s32 4294967266, %v1546
    %v1552 = vadd.s32 %v1551, 127
    %v1553 = vshll.u32 %v1552, 23
    %v1554 = vor.u32 4788187, %v1553
    %v1555 = vand.u32 2147483647, %v1554
    %v1557 = vcvt.s32.f32 %v1550
    %v1558 = vmul.f32 %v1557, %v1555
    %v1559 = vxor.u32 %v1558, 2147483648
    %v1560 = vsel %vm1477, %v1559, %v1558
    %v1561 = vsub.s32 4, %v1537
    %v1562 = vsel %vm1477, %v1561, %v1537
    %v1563 = vsel %vm1476, %v439, %v1560
    %v1564 = vsel %vm1476, 0, %v1562
    %v1565 = vcosq.f32.pop %v1563
    %v1566 = vsinq.f32.pop %v1563
    %vm1567 = vweird.f32 %v439
    %v1568 = vand.u32 %v1564, 3
    %vm1569 = vcmp.lt.s32.totalorder %v1568, 2
    %vm1570 = vcmp.eq.s32.totalorder %v1568, 0
    %v1571 = vxor.u32 %v1566, 2147483648
    %v1572 = vsel %vm1570, %v1565, %v1571
    %vm1573 = vcmp.eq.s32.totalorder %v1568, 2
    %v1574 = vxor.u32 %v1565, 2147483648
    %v1575 = vsel %vm1573, %v1574, %v1566
    %v1576 = vsel %vm1569, %v1572, %v1575
    %v1577 = vsel %vm1567, nan, %v1576
    %v1578 = vand.u32 2147483647, %v440
    %vm1579 = vcmp.le.f32.partialorder %v1578, 0.7853982
    %vm1580 = vcmp.lt.s32.totalorder %v440, 0
    %v1581 = vand.u32 %v440, 2139095040
    %v1582 = vshrl.u32 %v1581, 23
    %v1583 = vsub.s32 %v1582, 127
    %v1584 = vand.u32 2147483647, %v440
    %v1585 = vand.u32 %v1584, 8388607
    %v1586 = vor.u32 %v1585, 8388608
    %v1587 = vsub.s32 0, %v1586
    %v1588 = vadd.s32 %v1583, 1
    %vm1589 = vcmp.gt.s32.totalorder %v1588, 0
    %v1590 = vsel %vm1589, %v1588, 0
    %v1591 = vshrl.u32 %v1590, 5
    %v1592 = vand.u32 %v1590, 31
    %v1593 = vsub.s32 32, %v1592
    %v1594 = vshrl.u32 683565275, %v1593
    %v1595 = vshll.u32 683565275, %v1592
    %v1596 = vshrl.u32 2475754826, %v1593
    %v1597 = vor.u32 %v1595, %v1596
    %v1598 = vshll.u32 2475754826, %v1592
    %v1599 = vshrl.u32 2131351028, %v1593
    %v1600 = vor.u32 %v1598, %v1599
    %v1601 = vshll.u32 2131351028, %v1592
    %v1602 = vshrl.u32 2102212464, %v1593
    %v1603 = vor.u32 %v1601, %v1602
    %v1604 = vshll.u32 2102212464, %v1592
    %v1605 = vshrl.u32 920167782, %v1593
    %v1606 = vor.u32 %v1604, %v1605
    %v1607 = vshll.u32 920167782, %v1592
    %v1608 = vshrl.u32 1326507024, %v1593
    %v1609 = vor.u32 %v1607, %v1608
    %vm1610 = vcmp.lt.s32.totalorder %v1591, 1
    %vm1611 = vcmp.lt.s32.totalorder %v1591, 2
    %vm1612 = vcmp.lt.s32.totalorder %v1591, 3
    %vm1613 = vcmp.lt.s32.totalorder %v1591, 4
    %v1614 = vsel %vm1610, %v1594, %v1597
    %v1615 = vsel %vm1613, %v1603, 2102212464
    %v1616 = vsel %vm1612, %v1600, %v1615
    %v1617 = vsel %vm1611, %v1614, %v1616
    %v1618 = vsel %vm1610, %v1597, %v1600
    %v1619 = vsel %vm1613, %v1606, 920167782
    %v1620 = vsel %vm1612, %v1603, %v1619
    %v1621 = vsel %vm1611, %v1618, %v1620
    %v1622 = vsel %vm1610, %v1600, %v1603
    %v1623 = vsel %vm1613, %v1609, 1326507024
    %v1624 = vsel %vm1612, %v1606, %v1623
    %v1625 = vsel %vm1611, %v1622, %v1624
    %v1626 = vshll.u32 %v1586, 8
    %v1627 = vmul.u32.u64.compose %v1626, %v1625
    %v1628 = vextract.low.u32 %v1627
    %v1629 = vextract.high.u32 %v1627
    %v1630 = vmul.u32.u64.compose %v1626, %v1621
    %v1631 = vextract.low.u32 %v1630
    %v1632 = vextract.high.u32 %v1630
    %v1633 = vmul.u32 %v1626, %v1617
    %v1634 = vadd.s32 %v1629, %v1631
    %vm1635 = vc.u32 %v1629, %v1631
    %v1636 = vadd.s32 %v1632, 1
    %v1637 = vsel %vm1635, %v1636, %v1632
    %v1638 = vadd.s32 %v1633, %v1637
    %v1639 = vadd.s32 %v1638, 536870912
    %v1640 = vshrl.u32 %v1639, 30
    %v1641 = vshll.u32 %v1640, 30
    %v1642 = vsub.s32 %v1638, %v1641
    %vm1643 = vcmp.lt.s32.totalorder %v1642, 0
    %v1644 = vsub.s32 0, %v1642
    %v1645 = vsel %vm1643, %v1644, %v1642
    %v1646 = vclz %v1645
    %v1647 = vsub.s32 %v1646, 2
    %vm1648 = vcmp.gt.s32.totalorder 0, %v1647
    %v1649 = vsel %vm1648, 0, %v1647
    %v1650 = vsub.s32 32, %v1649
    %v1651 = vshll.u32 %v1642, %v1649
    %v1652 = vshrl.u32 %v1634, %v1650
    %v1653 = vor.u32 %v1651, %v1652
    %v1654 = vsub.s32 4294967266, %v1649
    %v1655 = vadd.s32 %v1654, 127
    %v1656 = vshll.u32 %v1655, 23
    %v1657 = vor.u32 4788187, %v1656
    %v1658 = vand.u32 2147483647, %v1657
    %v1660 = vcvt.s32.f32 %v1653
    %v1661 = vmul.f32 %v1660, %v1658
    %v1662 = vxor.u32 %v1661, 2147483648
    %v1663 = vsel %vm1580, %v1662, %v1661
    %v1664 = vsub.s32 4, %v1640
    %v1665 = vsel %vm1580, %v1664, %v1640
    %v1666 = vsel %vm1579, %v440, %v1663
    %v1667 = vsel %vm1579, 0, %v1665
    %v1668 = vcosq.f32.pop %v1666
    %v1669 = vsinq.f32.pop %v1666
    %vm1670 = vweird.f32 %v440
    %v1671 = vand.u32 %v1667, 3
    %vm1672 = vcmp.lt.s32.totalorder %v1671, 2
    %vm1673 = vcmp.eq.s32.totalorder %v1671, 0
    %v1674 = vxor.u32 %v1669, 2147483648
    %v1675 = vsel %vm1673, %v1668, %v1674
    %vm1676 = vcmp.eq.s32.totalorder %v1671, 2
    %v1677 = vxor.u32 %v1668, 2147483648
    %v1678 = vsel %vm1676, %v1677, %v1669
    %v1679 = vsel %vm1672, %v1675, %v1678
    %v1680 = vsel %vm1670, nan, %v1679
    %v1681 = vand.u32 2147483647, %v441
    %vm1682 = vcmp.le.f32.partialorder %v1681, 0.7853982
    %vm1683 = vcmp.lt.s32.totalorder %v441, 0
    %v1684 = vand.u32 %v441, 2139095040
    %v1685 = vshrl.u32 %v1684, 23
    %v1686 = vsub.s32 %v1685, 127
    %v1687 = vand.u32 2147483647, %v441
    %v1688 = vand.u32 %v1687, 8388607
    %v1689 = vor.u32 %v1688, 8388608
    %v1690 = vsub.s32 0, %v1689
    %v1691 = vadd.s32 %v1686, 1
    %vm1692 = vcmp.gt.s32.totalorder %v1691, 0
    %v1693 = vsel %vm1692, %v1691, 0
    %v1694 = vshrl.u32 %v1693, 5
    %v1695 = vand.u32 %v1693, 31
    %v1696 = vsub.s32 32, %v1695
    %v1697 = vshrl.u32 683565275, %v1696
    %v1698 = vshll.u32 683565275, %v1695
    %v1699 = vshrl.u32 2475754826, %v1696
    %v1700 = vor.u32 %v1698, %v1699
    %v1701 = vshll.u32 2475754826, %v1695
    %v1702 = vshrl.u32 2131351028, %v1696
    %v1703 = vor.u32 %v1701, %v1702
    %v1704 = vshll.u32 2131351028, %v1695
    %v1705 = vshrl.u32 2102212464, %v1696
    %v1706 = vor.u32 %v1704, %v1705
    %v1707 = vshll.u32 2102212464, %v1695
    %v1708 = vshrl.u32 920167782, %v1696
    %v1709 = vor.u32 %v1707, %v1708
    %v1710 = vshll.u32 920167782, %v1695
    %v1711 = vshrl.u32 1326507024, %v1696
    %v1712 = vor.u32 %v1710, %v1711
    %vm1713 = vcmp.lt.s32.totalorder %v1694, 1
    %vm1714 = vcmp.lt.s32.totalorder %v1694, 2
    %vm1715 = vcmp.lt.s32.totalorder %v1694, 3
    %vm1716 = vcmp.lt.s32.totalorder %v1694, 4
    %v1717 = vsel %vm1713, %v1697, %v1700
    %v1718 = vsel %vm1716, %v1706, 2102212464
    %v1719 = vsel %vm1715, %v1703, %v1718
    %v1720 = vsel %vm1714, %v1717, %v1719
    %v1721 = vsel %vm1713, %v1700, %v1703
    %v1722 = vsel %vm1716, %v1709, 920167782
    %v1723 = vsel %vm1715, %v1706, %v1722
    %v1724 = vsel %vm1714, %v1721, %v1723
    %v1725 = vsel %vm1713, %v1703, %v1706
    %v1726 = vsel %vm1716, %v1712, 1326507024
    %v1727 = vsel %vm1715, %v1709, %v1726
    %v1728 = vsel %vm1714, %v1725, %v1727
    %v1729 = vshll.u32 %v1689, 8
    %v1730 = vmul.u32.u64.compose %v1729, %v1728
    %v1731 = vextract.low.u32 %v1730
    %v1732 = vextract.high.u32 %v1730
    %v1733 = vmul.u32.u64.compose %v1729, %v1724
    %v1734 = vextract.low.u32 %v1733
    %v1735 = vextract.high.u32 %v1733
    %v1736 = vmul.u32 %v1729, %v1720
    %v1737 = vadd.s32 %v1732, %v1734
    %vm1738 = vc.u32 %v1732, %v1734
    %v1739 = vadd.s32 %v1735, 1
    %v1740 = vsel %vm1738, %v1739, %v1735
    %v1741 = vadd.s32 %v1736, %v1740
    %v1742 = vadd.s32 %v1741, 536870912
    %v1743 = vshrl.u32 %v1742, 30
    %v1744 = vshll.u32 %v1743, 30
    %v1745 = vsub.s32 %v1741, %v1744
    %vm1746 = vcmp.lt.s32.totalorder %v1745, 0
    %v1747 = vsub.s32 0, %v1745
    %v1748 = vsel %vm1746, %v1747, %v1745
    %v1749 = vclz %v1748
    %v1750 = vsub.s32 %v1749, 2
    %vm1751 = vcmp.gt.s32.totalorder 0, %v1750
    %v1752 = vsel %vm1751, 0, %v1750
    %v1753 = vsub.s32 32, %v1752
    %v1754 = vshll.u32 %v1745, %v1752
    %v1755 = vshrl.u32 %v1737, %v1753
    %v1756 = vor.u32 %v1754, %v1755
    %v1757 = vsub.s32 4294967266, %v1752
    %v1758 = vadd.s32 %v1757, 127
    %v1759 = vshll.u32 %v1758, 23
    %v1760 = vor.u32 4788187, %v1759
    %v1761 = vand.u32 2147483647, %v1760
    %v1763 = vcvt.s32.f32 %v1756
    %v1764 = vmul.f32 %v1763, %v1761
    %v1765 = vxor.u32 %v1764, 2147483648
    %v1766 = vsel %vm1683, %v1765, %v1764
    %v1767 = vsub.s32 4, %v1743
    %v1768 = vsel %vm1683, %v1767, %v1743
    %v1769 = vsel %vm1682, %v441, %v1766
    %v1770 = vsel %vm1682, 0, %v1768
    %v1771 = vcosq.f32.pop %v1769
    %v1772 = vsinq.f32.pop %v1769
    %vm1773 = vweird.f32 %v441
    %v1774 = vand.u32 %v1770, 3
    %vm1775 = vcmp.lt.s32.totalorder %v1774, 2
    %vm1776 = vcmp.eq.s32.totalorder %v1774, 0
    %v1777 = vxor.u32 %v1772, 2147483648
    %v1778 = vsel %vm1776, %v1771, %v1777
    %vm1779 = vcmp.eq.s32.totalorder %v1774, 2
    %v1780 = vxor.u32 %v1771, 2147483648
    %v1781 = vsel %vm1779, %v1780, %v1772
    %v1782 = vsel %vm1775, %v1778, %v1781
    %v1783 = vsel %vm1773, nan, %v1782
    %v1784 = vand.u32 2147483647, %v442
    %vm1785 = vcmp.le.f32.partialorder %v1784, 0.7853982
    %vm1786 = vcmp.lt.s32.totalorder %v442, 0
    %v1787 = vand.u32 %v442, 2139095040
    %v1788 = vshrl.u32 %v1787, 23
    %v1789 = vsub.s32 %v1788, 127
    %v1790 = vand.u32 2147483647, %v442
    %v1791 = vand.u32 %v1790, 8388607
    %v1792 = vor.u32 %v1791, 8388608
    %v1793 = vsub.s32 0, %v1792
    %v1794 = vadd.s32 %v1789, 1
    %vm1795 = vcmp.gt.s32.totalorder %v1794, 0
    %v1796 = vsel %vm1795, %v1794, 0
    %v1797 = vshrl.u32 %v1796, 5
    %v1798 = vand.u32 %v1796, 31
    %v1799 = vsub.s32 32, %v1798
    %v1800 = vshrl.u32 683565275, %v1799
    %v1801 = vshll.u32 683565275, %v1798
    %v1802 = vshrl.u32 2475754826, %v1799
    %v1803 = vor.u32 %v1801, %v1802
    %v1804 = vshll.u32 2475754826, %v1798
    %v1805 = vshrl.u32 2131351028, %v1799
    %v1806 = vor.u32 %v1804, %v1805
    %v1807 = vshll.u32 2131351028, %v1798
    %v1808 = vshrl.u32 2102212464, %v1799
    %v1809 = vor.u32 %v1807, %v1808
    %v1810 = vshll.u32 2102212464, %v1798
    %v1811 = vshrl.u32 920167782, %v1799
    %v1812 = vor.u32 %v1810, %v1811
    %v1813 = vshll.u32 920167782, %v1798
    %v1814 = vshrl.u32 1326507024, %v1799
    %v1815 = vor.u32 %v1813, %v1814
    %vm1816 = vcmp.lt.s32.totalorder %v1797, 1
    %vm1817 = vcmp.lt.s32.totalorder %v1797, 2
    %vm1818 = vcmp.lt.s32.totalorder %v1797, 3
    %vm1819 = vcmp.lt.s32.totalorder %v1797, 4
    %v1820 = vsel %vm1816, %v1800, %v1803
    %v1821 = vsel %vm1819, %v1809, 2102212464
    %v1822 = vsel %vm1818, %v1806, %v1821
    %v1823 = vsel %vm1817, %v1820, %v1822
    %v1824 = vsel %vm1816, %v1803, %v1806
    %v1825 = vsel %vm1819, %v1812, 920167782
    %v1826 = vsel %vm1818, %v1809, %v1825
    %v1827 = vsel %vm1817, %v1824, %v1826
    %v1828 = vsel %vm1816, %v1806, %v1809
    %v1829 = vsel %vm1819, %v1815, 1326507024
    %v1830 = vsel %vm1818, %v1812, %v1829
    %v1831 = vsel %vm1817, %v1828, %v1830
    %v1832 = vshll.u32 %v1792, 8
    %v1833 = vmul.u32.u64.compose %v1832, %v1831
    %v1834 = vextract.low.u32 %v1833
    %v1835 = vextract.high.u32 %v1833
    %v1836 = vmul.u32.u64.compose %v1832, %v1827
    %v1837 = vextract.low.u32 %v1836
    %v1838 = vextract.high.u32 %v1836
    %v1839 = vmul.u32 %v1832, %v1823
    %v1840 = vadd.s32 %v1835, %v1837
    %vm1841 = vc.u32 %v1835, %v1837
    %v1842 = vadd.s32 %v1838, 1
    %v1843 = vsel %vm1841, %v1842, %v1838
    %v1844 = vadd.s32 %v1839, %v1843
    %v1845 = vadd.s32 %v1844, 536870912
    %v1846 = vshrl.u32 %v1845, 30
    %v1847 = vshll.u32 %v1846, 30
    %v1848 = vsub.s32 %v1844, %v1847
    %vm1849 = vcmp.lt.s32.totalorder %v1848, 0
    %v1850 = vsub.s32 0, %v1848
    %v1851 = vsel %vm1849, %v1850, %v1848
    %v1852 = vclz %v1851
    %v1853 = vsub.s32 %v1852, 2
    %vm1854 = vcmp.gt.s32.totalorder 0, %v1853
    %v1855 = vsel %vm1854, 0, %v1853
    %v1856 = vsub.s32 32, %v1855
    %v1857 = vshll.u32 %v1848, %v1855
    %v1858 = vshrl.u32 %v1840, %v1856
    %v1859 = vor.u32 %v1857, %v1858
    %v1860 = vsub.s32 4294967266, %v1855
    %v1861 = vadd.s32 %v1860, 127
    %v1862 = vshll.u32 %v1861, 23
    %v1863 = vor.u32 4788187, %v1862
    %v1864 = vand.u32 2147483647, %v1863
    %v1866 = vcvt.s32.f32 %v1859
    %v1867 = vmul.f32 %v1866, %v1864
    %v1868 = vxor.u32 %v1867, 2147483648
    %v1869 = vsel %vm1786, %v1868, %v1867
    %v1870 = vsub.s32 4, %v1846
    %v1871 = vsel %vm1786, %v1870, %v1846
    %v1872 = vsel %vm1785, %v442, %v1869
    %v1873 = vsel %vm1785, 0, %v1871
    %v1874 = vcosq.f32.pop %v1872
    %v1875 = vsinq.f32.pop %v1872
    %vm1876 = vweird.f32 %v442
    %v1877 = vand.u32 %v1873, 3
    %vm1878 = vcmp.lt.s32.totalorder %v1877, 2
    %vm1879 = vcmp.eq.s32.totalorder %v1877, 0
    %v1880 = vxor.u32 %v1875, 2147483648
    %v1881 = vsel %vm1879, %v1874, %v1880
    %vm1882 = vcmp.eq.s32.totalorder %v1877, 2
    %v1883 = vxor.u32 %v1874, 2147483648
    %v1884 = vsel %vm1882, %v1883, %v1875
    %v1885 = vsel %vm1878, %v1881, %v1884
    %v1886 = vsel %vm1876, nan, %v1885
    %v1887 = vand.u32 2147483647, %v443
    %vm1888 = vcmp.le.f32.partialorder %v1887, 0.7853982
    %vm1889 = vcmp.lt.s32.totalorder %v443, 0
    %v1890 = vand.u32 %v443, 2139095040
    %v1891 = vshrl.u32 %v1890, 23
    %v1892 = vsub.s32 %v1891, 127
    %v1893 = vand.u32 2147483647, %v443
    %v1894 = vand.u32 %v1893, 8388607
    %v1895 = vor.u32 %v1894, 8388608
    %v1896 = vsub.s32 0, %v1895
    %v1897 = vadd.s32 %v1892, 1
    %vm1898 = vcmp.gt.s32.totalorder %v1897, 0
    %v1899 = vsel %vm1898, %v1897, 0
    %v1900 = vshrl.u32 %v1899, 5
    %v1901 = vand.u32 %v1899, 31
    %v1902 = vsub.s32 32, %v1901
    %v1903 = vshrl.u32 683565275, %v1902
    %v1904 = vshll.u32 683565275, %v1901
    %v1905 = vshrl.u32 2475754826, %v1902
    %v1906 = vor.u32 %v1904, %v1905
    %v1907 = vshll.u32 2475754826, %v1901
    %v1908 = vshrl.u32 2131351028, %v1902
    %v1909 = vor.u32 %v1907, %v1908
    %v1910 = vshll.u32 2131351028, %v1901
    %v1911 = vshrl.u32 2102212464, %v1902
    %v1912 = vor.u32 %v1910, %v1911
    %v1913 = vshll.u32 2102212464, %v1901
    %v1914 = vshrl.u32 920167782, %v1902
    %v1915 = vor.u32 %v1913, %v1914
    %v1916 = vshll.u32 920167782, %v1901
    %v1917 = vshrl.u32 1326507024, %v1902
    %v1918 = vor.u32 %v1916, %v1917
    %vm1919 = vcmp.lt.s32.totalorder %v1900, 1
    %vm1920 = vcmp.lt.s32.totalorder %v1900, 2
    %vm1921 = vcmp.lt.s32.totalorder %v1900, 3
    %vm1922 = vcmp.lt.s32.totalorder %v1900, 4
    %v1923 = vsel %vm1919, %v1903, %v1906
    %v1924 = vsel %vm1922, %v1912, 2102212464
    %v1925 = vsel %vm1921, %v1909, %v1924
    %v1926 = vsel %vm1920, %v1923, %v1925
    %v1927 = vsel %vm1919, %v1906, %v1909
    %v1928 = vsel %vm1922, %v1915, 920167782
    %v1929 = vsel %vm1921, %v1912, %v1928
    %v1930 = vsel %vm1920, %v1927, %v1929
    %v1931 = vsel %vm1919, %v1909, %v1912
    %v1932 = vsel %vm1922, %v1918, 1326507024
    %v1933 = vsel %vm1921, %v1915, %v1932
    %v1934 = vsel %vm1920, %v1931, %v1933
    %v1935 = vshll.u32 %v1895, 8
    %v1936 = vmul.u32.u64.compose %v1935, %v1934
    %v1937 = vextract.low.u32 %v1936
    %v1938 = vextract.high.u32 %v1936
    %v1939 = vmul.u32.u64.compose %v1935, %v1930
    %v1940 = vextract.low.u32 %v1939
    %v1941 = vextract.high.u32 %v1939
    %v1942 = vmul.u32 %v1935, %v1926
    %v1943 = vadd.s32 %v1938, %v1940
    %vm1944 = vc.u32 %v1938, %v1940
    %v1945 = vadd.s32 %v1941, 1
    %v1946 = vsel %vm1944, %v1945, %v1941
    %v1947 = vadd.s32 %v1942, %v1946
    %v1948 = vadd.s32 %v1947, 536870912
    %v1949 = vshrl.u32 %v1948, 30
    %v1950 = vshll.u32 %v1949, 30
    %v1951 = vsub.s32 %v1947, %v1950
    %vm1952 = vcmp.lt.s32.totalorder %v1951, 0
    %v1953 = vsub.s32 0, %v1951
    %v1954 = vsel %vm1952, %v1953, %v1951
    %v1955 = vclz %v1954
    %v1956 = vsub.s32 %v1955, 2
    %vm1957 = vcmp.gt.s32.totalorder 0, %v1956
    %v1958 = vsel %vm1957, 0, %v1956
    %v1959 = vsub.s32 32, %v1958
    %v1960 = vshll.u32 %v1951, %v1958
    %v1961 = vshrl.u32 %v1943, %v1959
    %v1962 = vor.u32 %v1960, %v1961
    %v1963 = vsub.s32 4294967266, %v1958
    %v1964 = vadd.s32 %v1963, 127
    %v1965 = vshll.u32 %v1964, 23
    %v1966 = vor.u32 4788187, %v1965
    %v1967 = vand.u32 2147483647, %v1966
    %v1969 = vcvt.s32.f32 %v1962
    %v1970 = vmul.f32 %v1969, %v1967
    %v1971 = vxor.u32 %v1970, 2147483648
    %v1972 = vsel %vm1889, %v1971, %v1970
    %v1973 = vsub.s32 4, %v1949
    %v1974 = vsel %vm1889, %v1973, %v1949
    %v1975 = vsel %vm1888, %v443, %v1972
    %v1976 = vsel %vm1888, 0, %v1974
    %v1977 = vcosq.f32.pop %v1975
    %v1978 = vsinq.f32.pop %v1975
    %vm1979 = vweird.f32 %v443
    %v1980 = vand.u32 %v1976, 3
    %vm1981 = vcmp.lt.s32.totalorder %v1980, 2
    %vm1982 = vcmp.eq.s32.totalorder %v1980, 0
    %v1983 = vxor.u32 %v1978, 2147483648
    %v1984 = vsel %vm1982, %v1977, %v1983
    %vm1985 = vcmp.eq.s32.totalorder %v1980, 2
    %v1986 = vxor.u32 %v1977, 2147483648
    %v1987 = vsel %vm1985, %v1986, %v1978
    %v1988 = vsel %vm1981, %v1984, %v1987
    %v1989 = vsel %vm1979, nan, %v1988
    %v1990 = vand.u32 2147483647, %v444
    %vm1991 = vcmp.le.f32.partialorder %v1990, 0.7853982
    %vm1992 = vcmp.lt.s32.totalorder %v444, 0
    %v1993 = vand.u32 %v444, 2139095040
    %v1994 = vshrl.u32 %v1993, 23
    %v1995 = vsub.s32 %v1994, 127
    %v1996 = vand.u32 2147483647, %v444
    %v1997 = vand.u32 %v1996, 8388607
    %v1998 = vor.u32 %v1997, 8388608
    %v1999 = vsub.s32 0, %v1998
    %v2000 = vadd.s32 %v1995, 1
    %vm2001 = vcmp.gt.s32.totalorder %v2000, 0
    %v2002 = vsel %vm2001, %v2000, 0
    %v2003 = vshrl.u32 %v2002, 5
    %v2004 = vand.u32 %v2002, 31
    %v2005 = vsub.s32 32, %v2004
    %v2006 = vshrl.u32 683565275, %v2005
    %v2007 = vshll.u32 683565275, %v2004
    %v2008 = vshrl.u32 2475754826, %v2005
    %v2009 = vor.u32 %v2007, %v2008
    %v2010 = vshll.u32 2475754826, %v2004
    %v2011 = vshrl.u32 2131351028, %v2005
    %v2012 = vor.u32 %v2010, %v2011
    %v2013 = vshll.u32 2131351028, %v2004
    %v2014 = vshrl.u32 2102212464, %v2005
    %v2015 = vor.u32 %v2013, %v2014
    %v2016 = vshll.u32 2102212464, %v2004
    %v2017 = vshrl.u32 920167782, %v2005
    %v2018 = vor.u32 %v2016, %v2017
    %v2019 = vshll.u32 920167782, %v2004
    %v2020 = vshrl.u32 1326507024, %v2005
    %v2021 = vor.u32 %v2019, %v2020
    %vm2022 = vcmp.lt.s32.totalorder %v2003, 1
    %vm2023 = vcmp.lt.s32.totalorder %v2003, 2
    %vm2024 = vcmp.lt.s32.totalorder %v2003, 3
    %vm2025 = vcmp.lt.s32.totalorder %v2003, 4
    %v2026 = vsel %vm2022, %v2006, %v2009
    %v2027 = vsel %vm2025, %v2015, 2102212464
    %v2028 = vsel %vm2024, %v2012, %v2027
    %v2029 = vsel %vm2023, %v2026, %v2028
    %v2030 = vsel %vm2022, %v2009, %v2012
    %v2031 = vsel %vm2025, %v2018, 920167782
    %v2032 = vsel %vm2024, %v2015, %v2031
    %v2033 = vsel %vm2023, %v2030, %v2032
    %v2034 = vsel %vm2022, %v2012, %v2015
    %v2035 = vsel %vm2025, %v2021, 1326507024
    %v2036 = vsel %vm2024, %v2018, %v2035
    %v2037 = vsel %vm2023, %v2034, %v2036
    %v2038 = vshll.u32 %v1998, 8
    %v2039 = vmul.u32.u64.compose %v2038, %v2037
    %v2040 = vextract.low.u32 %v2039
    %v2041 = vextract.high.u32 %v2039
    %v2042 = vmul.u32.u64.compose %v2038, %v2033
    %v2043 = vextract.low.u32 %v2042
    %v2044 = vextract.high.u32 %v2042
    %v2045 = vmul.u32 %v2038, %v2029
    %v2046 = vadd.s32 %v2041, %v2043
    %vm2047 = vc.u32 %v2041, %v2043
    %v2048 = vadd.s32 %v2044, 1
    %v2049 = vsel %vm2047, %v2048, %v2044
    %v2050 = vadd.s32 %v2045, %v2049
    %v2051 = vadd.s32 %v2050, 536870912
    %v2052 = vshrl.u32 %v2051, 30
    %v2053 = vshll.u32 %v2052, 30
    %v2054 = vsub.s32 %v2050, %v2053
    %vm2055 = vcmp.lt.s32.totalorder %v2054, 0
    %v2056 = vsub.s32 0, %v2054
    %v2057 = vsel %vm2055, %v2056, %v2054
    %v2058 = vclz %v2057
    %v2059 = vsub.s32 %v2058, 2
    %vm2060 = vcmp.gt.s32.totalorder 0, %v2059
    %v2061 = vsel %vm2060, 0, %v2059
    %v2062 = vsub.s32 32, %v2061
    %v2063 = vshll.u32 %v2054, %v2061
    %v2064 = vshrl.u32 %v2046, %v2062
    %v2065 = vor.u32 %v2063, %v2064
    %v2066 = vsub.s32 4294967266, %v2061
    %v2067 = vadd.s32 %v2066, 127
    %v2068 = vshll.u32 %v2067, 23
    %v2069 = vor.u32 4788187, %v2068
    %v2070 = vand.u32 2147483647, %v2069
    %v2072 = vcvt.s32.f32 %v2065
    %v2073 = vmul.f32 %v2072, %v2070
    %v2074 = vxor.u32 %v2073, 2147483648
    %v2075 = vsel %vm1992, %v2074, %v2073
    %v2076 = vsub.s32 4, %v2052
    %v2077 = vsel %vm1992, %v2076, %v2052
    %v2078 = vsel %vm1991, %v444, %v2075
    %v2079 = vsel %vm1991, 0, %v2077
    %v2080 = vcosq.f32.pop %v2078
    %v2081 = vsinq.f32.pop %v2078
    %vm2082 = vweird.f32 %v444
    %v2083 = vand.u32 %v2079, 3
    %vm2084 = vcmp.lt.s32.totalorder %v2083, 2
    %vm2085 = vcmp.eq.s32.totalorder %v2083, 0
    %v2086 = vxor.u32 %v2081, 2147483648
    %v2087 = vsel %vm2085, %v2080, %v2086
    %vm2088 = vcmp.eq.s32.totalorder %v2083, 2
    %v2089 = vxor.u32 %v2080, 2147483648
    %v2090 = vsel %vm2088, %v2089, %v2081
    %v2091 = vsel %vm2084, %v2087, %v2090
    %v2092 = vsel %vm2082, nan, %v2091
    %v2093 = vld [vmem:[#allocation7] sm:$0xff]
    %v2094 = vld [vmem:[#allocation7 + $0x8] sm:$0xff]
    %v2095 = vld [vmem:[#allocation7 + $0x10] sm:$0xff]
    %v2096 = vld [vmem:[#allocation7 + $0x18] sm:$0xff]
    %v2097 = vld [vmem:[#allocation7 + $0x20] sm:$0xff]
    %v2098 = vld [vmem:[#allocation7 + $0x28] sm:$0xff]
    %v2099 = vld [vmem:[#allocation7 + $0x30] sm:$0xff]
    %v2100 = vld [vmem:[#allocation7 + $0x38] sm:$0xff]
    %v2101 = vld [vmem:[#allocation7 + $0x40] sm:$0xff]
    %v2102 = vld [vmem:[#allocation7 + $0x48] sm:$0xff]
    %v2103 = vld [vmem:[#allocation7 + $0x50] sm:$0xff]
    %v2104 = vld [vmem:[#allocation7 + $0x58] sm:$0xff]
    %v2105 = vld [vmem:[#allocation7 + $0x60] sm:$0xff]
    %v2106 = vld [vmem:[#allocation7 + $0x68] sm:$0xff]
    %v2107 = vld [vmem:[#allocation7 + $0x70] sm:$0xff]
    %v2108 = vld [vmem:[#allocation7 + $0x78] sm:$0xff]
    %v2109 = vld [vmem:[#allocation7 + $0x80] sm:$0xff]
    %v2110 = vld [vmem:[#allocation7 + $0x88] sm:$0xff]
    %v2111 = vld [vmem:[#allocation7 + $0x90] sm:$0xff]
    %v2112 = vld [vmem:[#allocation7 + $0x98] sm:$0xff]
    %v2113 = vld [vmem:[#allocation7 + $0xa0] sm:$0xff]
    %v2114 = vld [vmem:[#allocation7 + $0xa8] sm:$0xff]
    %v2115 = vld [vmem:[#allocation7 + $0xb0] sm:$0xff]
    %v2116 = vld [vmem:[#allocation7 + $0xb8] sm:$0xff]
    %v2117 = vld [vmem:[#allocation7 + $0xc0] sm:$0xff]
    %v2118 = vld [vmem:[#allocation7 + $0xc8] sm:$0xff]
    %v2119 = vld [vmem:[#allocation7 + $0xd0] sm:$0xff]
    %v2120 = vld [vmem:[#allocation7 + $0xd8] sm:$0xff]
    %v2121 = vld [vmem:[#allocation7 + $0xe0] sm:$0xff]
    %v2122 = vld [vmem:[#allocation7 + $0xe8] sm:$0xff]
    %v2123 = vld [vmem:[#allocation7 + $0xf0] sm:$0xff]
    %v2124 = vld [vmem:[#allocation7 + $0xf8] sm:$0xff]
    %v2125 = vld [vmem:[%s7] sm:$0x1]
    %v2127 = vlaneseq
    %v2128 = vshrl.u32 %v2127, 7
    %v2129 = vsub.s32 0, %v2128
    %v2130 = vrot.slane %v2125, %v2129
    %2132 = vmatprep.subr.mxu0 0.0
    %2133 = vmatpush1.msra.mxu0 %v2093
    %2134 = vmatprep.subr.mxu0 0.0
    %2135 = vmatpush1.msra.mxu0 %v2094
    %2136 = vmatprep.subr.mxu0 0.0
    %2137 = vmatpush1.msra.mxu0 %v2095
    %2138 = vmatprep.subr.mxu0 0.0
    %2139 = vmatpush1.msra.mxu0 %v2096
    %2140 = vmatprep.subr.mxu0 0.0
    %2141 = vmatpush1.msra.mxu0 %v2097
    %2142 = vmatprep.subr.mxu0 0.0
    %2143 = vmatpush1.msra.mxu0 %v2098
    %2144 = vmatprep.subr.mxu0 0.0
    %2145 = vmatpush1.msra.mxu0 %v2099
    %2146 = vmatprep.subr.mxu0 0.0
    %2147 = vmatpush1.msra.mxu0 %v2100
    %2148 = vmatprep.subr.mxu0 0.0
    %2149 = vmatpush1.msra.mxu0 %v2101
    %2150 = vmatprep.subr.mxu0 0.0
    %2151 = vmatpush1.msra.mxu0 %v2102
    %2152 = vmatprep.subr.mxu0 0.0
    %2153 = vmatpush1.msra.mxu0 %v2103
    %2154 = vmatprep.subr.mxu0 0.0
    %2155 = vmatpush1.msra.mxu0 %v2104
    %2156 = vmatprep.subr.mxu0 0.0
    %2157 = vmatpush1.msra.mxu0 %v2105
    %2158 = vmatprep.subr.mxu0 0.0
    %2159 = vmatpush1.msra.mxu0 %v2106
    %2160 = vmatprep.subr.mxu0 0.0
    %2161 = vmatpush1.msra.mxu0 %v2107
    %2162 = vmatprep.subr.mxu0 0.0
    %2163 = vmatpush1.msra.mxu0 %v2108
    %2164 = vmatprep.subr.mxu0 0.0
    %2165 = vmatpush1.msra.mxu0 %v2109
    %2166 = vmatprep.subr.mxu0 0.0
    %2167 = vmatpush1.msra.mxu0 %v2110
    %2168 = vmatprep.subr.mxu0 0.0
    %2169 = vmatpush1.msra.mxu0 %v2111
    %2170 = vmatprep.subr.mxu0 0.0
    %2171 = vmatpush1.msra.mxu0 %v2112
    %2172 = vmatprep.subr.mxu0 0.0
    %2173 = vmatpush1.msra.mxu0 %v2113
    %2174 = vmatprep.subr.mxu0 0.0
    %2175 = vmatpush1.msra.mxu0 %v2114
    %2176 = vmatprep.subr.mxu0 0.0
    %2177 = vmatpush1.msra.mxu0 %v2115
    %2178 = vmatprep.subr.mxu0 0.0
    %2179 = vmatpush1.msra.mxu0 %v2116
    %2180 = vmatprep.subr.mxu0 0.0
    %2181 = vmatpush1.msra.mxu0 %v2117
    %2182 = vmatprep.subr.mxu0 0.0
    %2183 = vmatpush1.msra.mxu0 %v2118
    %2184 = vmatprep.subr.mxu0 0.0
    %2185 = vmatpush1.msra.mxu0 %v2119
    %2186 = vmatprep.subr.mxu0 0.0
    %2187 = vmatpush1.msra.mxu0 %v2120
    %2188 = vmatprep.subr.mxu0 0.0
    %2189 = vmatpush1.msra.mxu0 %v2121
    %2190 = vmatprep.subr.mxu0 0.0
    %2191 = vmatpush1.msra.mxu0 %v2122
    %2192 = vmatprep.subr.mxu0 0.0
    %2193 = vmatpush1.msra.mxu0 %v2123
    %2194 = vmatprep.subr.mxu0 0.0
    %2195 = vmatpush1.msra.mxu0 %v2124
    %2196 = vmatprep.mubr.f32.mxu0 %v650
    %2197 = vmatmul.mubr.f32.gmra.mrb[0].mxu0 %v547
    %v2198 = vpop.f32.mrb[0].mxu0
    %v2199 = vadd.f32 %v2130, %v2198
    %v2200 = vpop.f32.mrb[0].mxu0
    %2201 = vmatprep.mubr.f32.mxu0 %v856
    %2202 = vmatmul.mubr.f32.gmra.mrb[0].mxu0 %v753
    %v2203 = vpop.f32.mrb[0].mxu0
    %v2204 = vadd.f32 %v2130, %v2203
    %v2205 = vpop.f32.mrb[0].mxu0
    %2206 = vmatprep.mubr.f32.mxu0 %v1062
    %2207 = vmatmul.mubr.f32.gmra.mrb[0].mxu0 %v959
    %v2208 = vpop.f32.mrb[0].mxu0
    %v2209 = vadd.f32 %v2130, %v2208
    %v2210 = vpop.f32.mrb[0].mxu0
    %2211 = vmatprep.mubr.f32.mxu0 %v1268
    %2212 = vmatmul.mubr.f32.gmra.mrb[0].mxu0 %v1165
    %v2213 = vpop.f32.mrb[0].mxu0
    %v2214 = vadd.f32 %v2130, %v2213
    %v2215 = vpop.f32.mrb[0].mxu0
    %2216 = vmatprep.mubr.f32.mxu0 %v1474
    %2217 = vmatmul.mubr.f32.gmra.mrb[0].mxu0 %v1371
    %v2218 = vpop.f32.mrb[0].mxu0
    %v2219 = vadd.f32 %v2130, %v2218
    %v2220 = vpop.f32.mrb[0].mxu0
    %2221 = vmatprep.mubr.f32.mxu0 %v1680
    %2222 = vmatmul.mubr.f32.gmra.mrb[0].mxu0 %v1577
    %v2223 = vpop.f32.mrb[0].mxu0
    %v2224 = vadd.f32 %v2130, %v2223
    %v2225 = vpop.f32.mrb[0].mxu0
    %2226 = vmatprep.mubr.f32.mxu0 %v1886
    %2227 = vmatmul.mubr.f32.gmra.mrb[0].mxu0 %v1783
    %v2228 = vpop.f32.mrb[0].mxu0
    %v2229 = vadd.f32 %v2130, %v2228
    %v2230 = vpop.f32.mrb[0].mxu0
    %2231 = vmatprep.mubr.f32.mxu0 %v2092
    %2232 = vmatmul.mubr.f32.gmra.mrb[0].mxu0 %v1989
    %v2233 = vpop.f32.mrb[0].mxu0
    %v2234 = vadd.f32 %v2130, %v2233
    %v2235 = vpop.f32.mrb[0].mxu0
    %2236 = vdwg.mxu0
    %v2237 = vmax.f32 %v2199, 0.0
    %v2238 = vmax.f32 %v2204, 0.0
    %v2239 = vmax.f32 %v2209, 0.0
    %v2240 = vmax.f32 %v2214, 0.0
    %v2241 = vmax.f32 %v2219, 0.0
    %v2242 = vmax.f32 %v2224, 0.0
    %v2243 = vmax.f32 %v2229, 0.0
    %v2244 = vmax.f32 %v2234, 0.0
    %v2245 = vmul.f32 %v2237, %v342
    %v2246 = vmul.f32 %v2238, %v347
    %v2247 = vmul.f32 %v2239, %v352
    %v2248 = vmul.f32 %v2240, %v357
    %v2249 = vmul.f32 %v2241, %v362
    %v2250 = vmul.f32 %v2242, %v367
    %v2251 = vmul.f32 %v2243, %v372
    %v2252 = vmul.f32 %v2244, %v377
    %v2253 = vld [vmem:[#allocation8] sm:$0xff]
    %v2254 = vld [vmem:[#allocation8 + $0x8] sm:$0xff]
    %v2255 = vld [vmem:[#allocation8 + $0x10] sm:$0xff]
    %v2256 = vld [vmem:[#allocation8 + $0x18] sm:$0xff]
    %v2257 = vld [vmem:[#allocation8 + $0x20] sm:$0xff]
    %v2258 = vld [vmem:[#allocation8 + $0x28] sm:$0xff]
    %v2259 = vld [vmem:[#allocation8 + $0x30] sm:$0xff]
    %v2260 = vld [vmem:[#allocation8 + $0x38] sm:$0xff]
    %v2261 = vld [vmem:[#allocation8 + $0x40] sm:$0xff]
    %v2262 = vld [vmem:[#allocation8 + $0x48] sm:$0xff]
    %v2263 = vld [vmem:[#allocation8 + $0x50] sm:$0xff]
    %v2264 = vld [vmem:[#allocation8 + $0x58] sm:$0xff]
    %v2265 = vld [vmem:[#allocation8 + $0x60] sm:$0xff]
    %v2266 = vld [vmem:[#allocation8 + $0x68] sm:$0xff]
    %v2267 = vld [vmem:[#allocation8 + $0x70] sm:$0xff]
    %v2268 = vld [vmem:[#allocation8 + $0x78] sm:$0xff]
    %v2269 = vld [vmem:[%s9] sm:$0x1]
    %v2271 = vlaneseq
    %v2272 = vshrl.u32 %v2271, 7
    %v2273 = vsub.s32 0, %v2272
    %v2274 = vrot.slane %v2269, %v2273
    %2276 = vmatprep.subr.mxu0 0.0
    %2277 = vmatpush1.msra.mxu0 %v2253
    %2278 = vmatprep.subr.mxu0 0.0
    %2279 = vmatpush1.msra.mxu0 %v2254
    %2280 = vmatprep.subr.mxu0 0.0
    %2281 = vmatpush1.msra.mxu0 %v2255
    %2282 = vmatprep.subr.mxu0 0.0
    %2283 = vmatpush1.msra.mxu0 %v2256
    %2284 = vmatprep.subr.mxu0 0.0
    %2285 = vmatpush1.msra.mxu0 %v2257
    %2286 = vmatprep.subr.mxu0 0.0
    %2287 = vmatpush1.msra.mxu0 %v2258
    %2288 = vmatprep.subr.mxu0 0.0
    %2289 = vmatpush1.msra.mxu0 %v2259
    %2290 = vmatprep.subr.mxu0 0.0
    %2291 = vmatpush1.msra.mxu0 %v2260
    %2292 = vmatprep.subr.mxu0 0.0
    %2293 = vmatpush1.msra.mxu0 %v2261
    %2294 = vmatprep.subr.mxu0 0.0
    %2295 = vmatpush1.msra.mxu0 %v2262
    %2296 = vmatprep.subr.mxu0 0.0
    %2297 = vmatpush1.msra.mxu0 %v2263
    %2298 = vmatprep.subr.mxu0 0.0
    %2299 = vmatpush1.msra.mxu0 %v2264
    %2300 = vmatprep.subr.mxu0 0.0
    %2301 = vmatpush1.msra.mxu0 %v2265
    %2302 = vmatprep.subr.mxu0 0.0
    %2303 = vmatpush1.msra.mxu0 %v2266
    %2304 = vmatprep.subr.mxu0 0.0
    %2305 = vmatpush1.msra.mxu0 %v2267
    %2306 = vmatprep.subr.mxu0 0.0
    %2307 = vmatpush1.msra.mxu0 %v2268
    %2308 = vmatprep.subr.mxu0 0.0
    %2309 = vmatpush1.msra.mxu0 0.0
    %2310 = vmatprep.subr.mxu0 0.0
    %2311 = vmatpush1.msra.mxu0 0.0
    %2312 = vmatprep.subr.mxu0 0.0
    %2313 = vmatpush1.msra.mxu0 0.0
    %2314 = vmatprep.subr.mxu0 0.0
    %2315 = vmatpush1.msra.mxu0 0.0
    %2316 = vmatprep.subr.mxu0 0.0
    %2317 = vmatpush1.msra.mxu0 0.0
    %2318 = vmatprep.subr.mxu0 0.0
    %2319 = vmatpush1.msra.mxu0 0.0
    %2320 = vmatprep.subr.mxu0 0.0
    %2321 = vmatpush1.msra.mxu0 0.0
    %2322 = vmatprep.subr.mxu0 0.0
    %2323 = vmatpush1.msra.mxu0 0.0
    %2324 = vmatprep.subr.mxu0 0.0
    %2325 = vmatpush1.msra.mxu0 0.0
    %2326 = vmatprep.subr.mxu0 0.0
    %2327 = vmatpush1.msra.mxu0 0.0
    %2328 = vmatprep.subr.mxu0 0.0
    %2329 = vmatpush1.msra.mxu0 0.0
    %2330 = vmatprep.subr.mxu0 0.0
    %2331 = vmatpush1.msra.mxu0 0.0
    %2332 = vmatprep.subr.mxu0 0.0
    %2333 = vmatpush1.msra.mxu0 0.0
    %2334 = vmatprep.subr.mxu0 0.0
    %2335 = vmatpush1.msra.mxu0 0.0
    %2336 = vmatprep.subr.mxu0 0.0
    %2337 = vmatpush1.msra.mxu0 0.0
    %2338 = vmatprep.subr.mxu0 0.0
    %2339 = vmatpush1.msra.mxu0 0.0
    %2340 = vmatprep.mubr.f32.mxu0 0.0
    %2341 = vmatmul.mubr.f32.gmra.mrb[0].mxu0 %v2245
    %v2342 = vpop.f32.mrb[0].mxu0
    %v2343 = vadd.f32 %v2274, %v2342
    %v2344 = vpop.f32.mrb[0].mxu0
    %2345 = vmatprep.mubr.f32.mxu0 0.0
    %2346 = vmatmul.mubr.f32.gmra.mrb[0].mxu0 %v2246
    %v2347 = vpop.f32.mrb[0].mxu0
    %v2348 = vadd.f32 %v2274, %v2347
    %v2349 = vpop.f32.mrb[0].mxu0
    %2350 = vmatprep.mubr.f32.mxu0 0.0
    %2351 = vmatmul.mubr.f32.gmra.mrb[0].mxu0 %v2247
    %v2352 = vpop.f32.mrb[0].mxu0
    %v2353 = vadd.f32 %v2274, %v2352
    %v2354 = vpop.f32.mrb[0].mxu0
    %2355 = vmatprep.mubr.f32.mxu0 0.0
    %2356 = vmatmul.mubr.f32.gmra.mrb[0].mxu0 %v2248
    %v2357 = vpop.f32.mrb[0].mxu0
    %v2358 = vadd.f32 %v2274, %v2357
    %v2359 = vpop.f32.mrb[0].mxu0
    %2360 = vmatprep.mubr.f32.mxu0 0.0
    %2361 = vmatmul.mubr.f32.gmra.mrb[0].mxu0 %v2249
    %v2362 = vpop.f32.mrb[0].mxu0
    %v2363 = vadd.f32 %v2274, %v2362
    %v2364 = vpop.f32.mrb[0].mxu0
    %2365 = vmatprep.mubr.f32.mxu0 0.0
    %2366 = vmatmul.mubr.f32.gmra.mrb[0].mxu0 %v2250
    %v2367 = vpop.f32.mrb[0].mxu0
    %v2368 = vadd.f32 %v2274, %v2367
    %v2369 = vpop.f32.mrb[0].mxu0
    %2370 = vmatprep.mubr.f32.mxu0 0.0
    %2371 = vmatmul.mubr.f32.gmra.mrb[0].mxu0 %v2251
    %v2372 = vpop.f32.mrb[0].mxu0
    %v2373 = vadd.f32 %v2274, %v2372
    %v2374 = vpop.f32.mrb[0].mxu0
    %2375 = vmatprep.mubr.f32.mxu0 0.0
    %2376 = vmatmul.mubr.f32.gmra.mrb[0].mxu0 %v2252
    %v2377 = vpop.f32.mrb[0].mxu0
    %v2378 = vadd.f32 %v2274, %v2377
    %v2379 = vpop.f32.mrb[0].mxu0
    %2380 = vdwg.mxu0
    %v2381 = vmax.f32 %v2343, 0.0
    %v2382 = vmax.f32 %v2348, 0.0
    %v2383 = vmax.f32 %v2353, 0.0
    %v2384 = vmax.f32 %v2358, 0.0
    %v2385 = vmax.f32 %v2363, 0.0
    %v2386 = vmax.f32 %v2368, 0.0
    %v2387 = vmax.f32 %v2373, 0.0
    %v2388 = vmax.f32 %v2378, 0.0
    %v2389 = vld [vmem:[%s10] sm:$0xf]
    %v2390 = vld [vmem:[%s11] sm:$0xf]
    %2392 = vset.pattern.permute.xlu0 0
    %2393 = vperm.xlu0 %2392, %v2390
    %v2394 = vpop.permute.xlu0 %2393
    %2396 = vmatprep.subr.mxu0 0.0
    %2397 = vmatpush1.xpose.msra.mxu0 %v2381
    %2398 = vmatprep.subr.mxu0 0.0
    %2399 = vmatpush1.xpose.msra.mxu0 %v2382
    %2400 = vmatprep.subr.mxu0 0.0
    %2401 = vmatpush1.xpose.msra.mxu0 %v2383
    %2402 = vmatprep.subr.mxu0 0.0
    %2403 = vmatpush1.xpose.msra.mxu0 %v2384
    %2404 = vmatprep.subr.mxu0 0.0
    %2405 = vmatpush1.xpose.msra.mxu0 %v2385
    %2406 = vmatprep.subr.mxu0 0.0
    %2407 = vmatpush1.xpose.msra.mxu0 %v2386
    %2408 = vmatprep.subr.mxu0 0.0
    %2409 = vmatpush1.xpose.msra.mxu0 %v2387
    %2410 = vmatprep.subr.mxu0 0.0
    %2411 = vmatpush1.xpose.msra.mxu0 %v2388
    %2412 = vmatprep.subr.mxu0 0.0
    %2413 = vmatpush1.xpose.msra.mxu0 0.0
    %2414 = vmatprep.subr.mxu0 0.0
    %2415 = vmatpush1.xpose.msra.mxu0 0.0
    %2416 = vmatprep.subr.mxu0 0.0
    %2417 = vmatpush1.xpose.msra.mxu0 0.0
    %2418 = vmatprep.subr.mxu0 0.0
    %2419 = vmatpush1.xpose.msra.mxu0 0.0
    %2420 = vmatprep.subr.mxu0 0.0
    %2421 = vmatpush1.xpose.msra.mxu0 0.0
    %2422 = vmatprep.subr.mxu0 0.0
    %2423 = vmatpush1.xpose.msra.mxu0 0.0
    %2424 = vmatprep.subr.mxu0 0.0
    %2425 = vmatpush1.xpose.msra.mxu0 0.0
    %2426 = vmatprep.subr.mxu0 0.0
    %2427 = vmatpush1.xpose.msra.mxu0 0.0
    %2428 = vmatprep.subr.mxu0 0.0
    %2429 = vmatpush1.xpose.msra.mxu0 0.0
    %2430 = vmatprep.subr.mxu0 0.0
    %2431 = vmatpush1.xpose.msra.mxu0 0.0
    %2432 = vmatprep.subr.mxu0 0.0
    %2433 = vmatpush1.xpose.msra.mxu0 0.0
    %2434 = vmatprep.subr.mxu0 0.0
    %2435 = vmatpush1.xpose.msra.mxu0 0.0
    %2436 = vmatprep.subr.mxu0 0.0
    %2437 = vmatpush1.xpose.msra.mxu0 0.0
    %2438 = vmatprep.subr.mxu0 0.0
    %2439 = vmatpush1.xpose.msra.mxu0 0.0
    %2440 = vmatprep.subr.mxu0 0.0
    %2441 = vmatpush1.xpose.msra.mxu0 0.0
    %2442 = vmatprep.subr.mxu0 0.0
    %2443 = vmatpush1.xpose.msra.mxu0 0.0
    %2444 = vmatprep.subr.mxu0 0.0
    %2445 = vmatpush1.xpose.msra.mxu0 0.0
    %2446 = vmatprep.subr.mxu0 0.0
    %2447 = vmatpush1.xpose.msra.mxu0 0.0
    %2448 = vmatprep.subr.mxu0 0.0
    %2449 = vmatpush1.xpose.msra.mxu0 0.0
    %2450 = vmatprep.subr.mxu0 0.0
    %2451 = vmatpush1.xpose.msra.mxu0 0.0
    %2452 = vmatprep.subr.mxu0 0.0
    %2453 = vmatpush1.xpose.msra.mxu0 0.0
    %2454 = vmatprep.subr.mxu0 0.0
    %2455 = vmatpush1.xpose.msra.mxu0 0.0
    %2456 = vmatprep.subr.mxu0 0.0
    %2457 = vmatpush1.xpose.msra.mxu0 0.0
    %2458 = vmatprep.subr.mxu0 0.0
    %2459 = vmatpush1.xpose.msra.mxu0 0.0
    %2460 = vmatprep.mubr.f32.mxu0 0.0
    %2461 = vmatmul.mubr.f32.gmra.mrb[0].mxu0 %v2389
    %v2462 = vpop.f32.mrb[0].mxu0
    %v2463 = vadd.f32 %v2394, %v2462
    %v2464 = vpop.f32.mrb[0].mxu0
    %2465 = vdwg.mxu0
    %vm2466 = vcmask 519168
    %2467 = vst.msk [vmem:[#allocation10] sm:$0xf] %vm2466, %v2463
    // Predicated region
    $region66: #{tpu_custom_call.1} parent=1 // pred_check
      _
    $region67: #{tpu_custom_call.1} parent=1 // pred_check_branch
      %2469 = sbr.rel (0) target = $region69
    $region68: #{tpu_custom_call.1} parent=1 // pred_region
      %s2471 = ssub.s32 64, 64
      %2472 = vsyncadd [#allocation4], %s2471
      %s2474 = sshll.u32 [#allocation10], 4
      %s2475 = int_to_ptr.vmem [resolvable:$true] %s2474
      %2477 = dma.vmem_to_hbm [thread:$0]  %s2475, 64, %s12, [#allocation4]
    $region69: #{tpu_custom_call.1} parent=1 // pred_fallthru
      _
    // Predicated region
    $region70: #{tpu_custom_call.1} parent=1 // pred_check
      _
    $region71: #{tpu_custom_call.1} parent=1 // pred_check_branch
      %2479 = sbr.rel (0) target = $region73
    $region72: #{tpu_custom_call.1} parent=1 // pred_region
      %2480 = dma.done [#allocation4], 64
    $region73: #{tpu_custom_call.1} parent=1 // pred_fallthru
      _
    %2481 = vsyncpa [#allocation3], 1
    %2482 = vsyncpa [#allocation6], 1
    %2483 = vsyncpa [#allocation9], 1
    %2484 = vsyncpa [#allocation4], 1

</llo_original>
